<compile_context>
chip_gen: v7x
topology: tpu7x:2x2x1
jax: 0.10.0
libtpu: 0.0.40
codegen_flags: <defaults>
</compile_context>

<pallas_src>
import functools

import jax
import jax.numpy as jnp
from jax import lax
from jax.experimental import pallas as pl
from jax.experimental.pallas import tpu as pltpu

HEAD_LANES = 128  # fused (reg | cls | pad) head output width


def _rs_box_head_kernel(x_ref, w1_ref, b1_ref, w2_ref, b2_ref,
                        wh_ref, bh_ref, lbl_ref, tgt_ref, wt_ref,
                        heads_ref, loss_ref, *, num_classes, reg_dim):
    # ---- shared 2-FC trunk: bf16 MXU matmuls, f32 accumulation ----
    h1 = jnp.dot(x_ref[...], w1_ref[...],
                 preferred_element_type=jnp.float32) + b1_ref[...]
    h1 = jnp.maximum(h1, 0.0).astype(jnp.bfloat16)
    h2 = jnp.dot(h1, w2_ref[...],
                 preferred_element_type=jnp.float32) + b2_ref[...]
    h2 = jnp.maximum(h2, 0.0).astype(jnp.bfloat16)

    # ---- fused heads: one 128-lane matmul, lanes = [reg | cls | pad] ----
    heads = jnp.dot(h2, wh_ref[...],
                    preferred_element_type=jnp.float32) + bh_ref[...]
    heads_ref[...] = heads.astype(jnp.bfloat16)        # lane-dense bf16 store

    # ---- classification loss: masked softmax CE via label pick ----
    lane = lax.broadcasted_iota(jnp.int32, heads.shape, 1)
    cls_lo = reg_dim
    cls_mask = (lane >= cls_lo) & (lane < cls_lo + num_classes)
    masked = jnp.where(cls_mask, heads, -jnp.inf)
    m = jnp.max(masked, axis=-1, keepdims=True)
    lse = jnp.log(jnp.sum(jnp.exp(masked - m), axis=-1, keepdims=True)) + m
    lbl = lbl_ref[...]                                  # (TM, 1) int32, -1 = pad row
    pick = (lane == (lbl + cls_lo)) & (lbl >= 0)
    partial_cls = jnp.sum(jnp.where(pick, lse - heads, 0.0))

    # ---- bbox loss: weighted smooth L1 (beta=1) on the narrow reg lanes ----
    diff = heads[:, :reg_dim] - tgt_ref[...]            # (TM, reg_dim)
    ad = jnp.abs(diff)
    partial_bbox = jnp.sum(
        jnp.where(ad < 1.0, 0.5 * diff * diff, ad - 0.5) * wt_ref[...])

    # ---- emit per-tile partials as one lane-dense (8,128) block ----
    sub8 = lax.broadcasted_iota(jnp.int32, (8, HEAD_LANES), 0)
    ln8 = lax.broadcasted_iota(jnp.int32, (8, HEAD_LANES), 1)
    loss_ref[...] = jnp.where(
        (sub8 == 0) & (ln8 == 0), partial_cls,
        jnp.where((sub8 == 0) & (ln8 == 1), partial_bbox, 0.0))

    # TODO(synk): ROI assignment/sampling and the RankSort-specific ranking loss
    # terms of roi_head.forward_train are not expressible here; labels / bbox
    # targets / bbox weights are precomputed and passed in.


@functools.partial(jax.jit, static_argnames=("tile_m",))
def rs_roi_box_head(x_flat, params, labels, bbox_targets,
                    bbox_weights=None, *, tile_m=256):
    n_roi, d = x_flat.shape
    hid = params["w1"].shape[1]
    num_classes = params["w_cls"].shape[1]
    reg_dim = params["w_reg"].shape[1]
    # TODO(synk): class-specific bbox regression (reg_dim = 4*num_classes) may
    # exceed the single fused 128-lane head; would need a wider / split head.
    assert num_classes + reg_dim <= HEAD_LANES

    # Row tile: >= 2 tiles whenever possible so v7x's two TensorCores both get
    # work via the ("parallel",) axis; tiles are multiples of 16 rows (bf16).
    desired = max(16, (tile_m // 16) * 16)
    half = max(16, (((n_roi + 1) // 2) + 15) // 16 * 16)
    tm = min(desired, half)
    n_tiles = pl.cdiv(n_roi, tm)
    n_pad = n_tiles * tm
    pad = n_pad - n_roi

    # ---- host-side prep (pads + casts).  In a real training loop the weight
    # casts / fused-head packing should be hoisted to once-per-step; here they
    # fuse into this jit.
    x_p = jnp.pad(x_flat, ((0, pad), (0, 0))).astype(jnp.bfloat16)

    labels_p = jnp.pad(labels.astype(jnp.int32).reshape(n_roi, 1),
                       ((0, pad), (0, 0)), constant_values=-1)
    tgt_p = jnp.pad(bbox_targets.astype(jnp.float32), ((0, pad), (0, 0)))
    if bbox_weights is None:
        bbox_weights = jnp.ones((n_roi, reg_dim), jnp.float32)
    wt_p = jnp.pad(bbox_weights.astype(jnp.float32), ((0, pad), (0, 0)))

    w1 = params["w1"].astype(jnp.bfloat16)
    w2 = params["w2"].astype(jnp.bfloat16)
    b1 = params["b1"].reshape(1, hid).astype(jnp.float32)
    b2 = params["b2"].reshape(1, hid).astype(jnp.float32)

    # Fused head weights / biases, lanes = [reg | cls | pad].
    w_heads = jnp.zeros((hid, HEAD_LANES), jnp.float32)
    w_heads = w_heads.at[:, :reg_dim].set(params["w_reg"])
    w_heads = w_heads.at[:, reg_dim:reg_dim + num_classes].set(params["w_cls"])
    w_heads = w_heads.astype(jnp.bfloat16)
    b_heads = jnp.zeros((1, HEAD_LANES), jnp.float32)
    b_heads = b_heads.at[:, :reg_dim].set(params["b_reg"].reshape(1, -1))
    b_heads = b_heads.at[:, reg_dim:reg_dim + num_classes].set(
        params["b_cls"].reshape(1, -1))

    def row_spec(cols):
        return pl.BlockSpec((tm, cols), lambda i: (i, 0))

    def const_spec(shape):
        # Resident weights: constant index_map -> fetched once, stays in VMEM.
        # TODO(synk): at production Shared2FC sizes on v7x (64 MiB VMEM) verify
        # single-buffering of these constant blocks in the MLIR (or use
        # pipeline_mode=pl.Buffered(1)) before raising tile_m.
        return pl.BlockSpec(shape, lambda i: tuple(0 for _ in shape))

    out_shapes = (
        jax.ShapeDtypeStruct((n_pad, HEAD_LANES), jnp.bfloat16),       # fused heads
        jax.ShapeDtypeStruct((n_tiles * 8, HEAD_LANES), jnp.float32),  # loss partials
    )
    out_specs = (
        pl.BlockSpec((tm, HEAD_LANES), lambda i: (i, 0)),
        pl.BlockSpec((8, HEAD_LANES), lambda i: (i, 0)),
    )

    kernel = functools.partial(_rs_box_head_kernel,
                               num_classes=num_classes, reg_dim=reg_dim)

    fn = pl.pallas_call(
        kernel,
        out_shape=out_shapes,
        grid=(n_tiles,),
        in_specs=[
            row_spec(d),                     # x (bf16, double-buffered)
            const_spec((d, hid)),            # w1 (VMEM-resident)
            const_spec((1, hid)),            # b1
            const_spec((hid, hid)),          # w2
            const_spec((1, hid)),            # b2
            const_spec((hid, HEAD_LANES)),   # fused head weights
            const_spec((1, HEAD_LANES)),     # fused head biases
            row_spec(1),                     # int32 labels (-1 = padded row)
            row_spec(reg_dim),               # bbox targets (reg_dim cols only)
            row_spec(reg_dim),               # bbox weights / validity
        ],
        out_specs=out_specs,
        compiler_params=pltpu.CompilerParams(
            dimension_semantics=("parallel",),
            vmem_limit_bytes=48 * 1024 * 1024,
        ),
    )
    heads, partials = fn(x_p, w1, b1, w2, b2, w_heads, b_heads,
                         labels_p, tgt_p, wt_p)

    partials = partials.reshape(n_tiles, 8, HEAD_LANES)
    n = jnp.float32(n_roi)
    # TODO(synk): mmdet normalizes loss_bbox by an avg_factor (e.g. #positives);
    # both losses are normalized by n_roi here.
    loss_cls = jnp.sum(partials[:, 0, 0]) / n
    loss_bbox = jnp.sum(partials[:, 0, 1]) / n

    heads_f32 = heads[:n_roi].astype(jnp.float32)
    bbox_pred = heads_f32[:, :reg_dim]
    cls_score = heads_f32[:, reg_dim:reg_dim + num_classes]
    return {
        "loss_cls": loss_cls,
        "loss_bbox": loss_bbox,
        "cls_score": cls_score,
        "bbox_pred": bbox_pred,
    }


if __name__ == "__main__":
    # Small synthetic shapes consistent with a Shared2FC bbox head.
    N_ROI = 200        # number of sampled ROIs (exercises 2 row tiles + padding)
    C = 4              # ROI-extractor output channels
    POOL = 8           # pooled ROI spatial size (POOL x POOL)
    D = C * POOL * POOL
    HID = 128          # shared FC hidden dim
    NUM_CLASSES = 8    # incl. background
    REG_DIM = 4        # class-agnostic box regression

    key = jax.random.PRNGKey(0)
    ks = jax.random.split(key, 8)

    # Pooled ROI features (NCHW), flattened row-major to (N_ROI, C*H*W).
    roi_feats = jax.random.normal(ks[0], (N_ROI, C, POOL, POOL), jnp.float32)
    x_flat = roi_feats.reshape(N_ROI, D)

    s = 0.02
    params = {
        "w1": s * jax.random.normal(ks[1], (D, HID), jnp.float32),
        "b1": jnp.zeros((1, HID), jnp.float32),
        "w2": s * jax.random.normal(ks[2], (HID, HID), jnp.float32),
        "b2": jnp.zeros((1, HID), jnp.float32),
        "w_cls": s * jax.random.normal(ks[3], (HID, NUM_CLASSES), jnp.float32),
        "b_cls": jnp.zeros((1, NUM_CLASSES), jnp.float32),
        "w_reg": s * jax.random.normal(ks[4], (HID, REG_DIM), jnp.float32),
        "b_reg": jnp.zeros((1, REG_DIM), jnp.float32),
    }

    labels = jax.random.randint(ks[5], (N_ROI,), 0, NUM_CLASSES)
    bbox_targets = 0.1 * jax.random.normal(ks[6], (N_ROI, REG_DIM), jnp.float32)

    out = rs_roi_box_head(x_flat, params, labels, bbox_targets)
    jax.block_until_ready(out)

    # ---- pure-JAX reference (same bf16 input rounding, f32 accumulation) ----
    hp = jax.lax.Precision.HIGHEST
    f32 = lambda a: a.astype(jnp.bfloat16).astype(jnp.float32)
    x_bf, w1_bf, w2_bf = f32(x_flat), f32(params["w1"]), f32(params["w2"])
    wc_bf, wr_bf = f32(params["w_cls"]), f32(params["w_reg"])

    h1 = jnp.maximum(jnp.dot(x_bf, w1_bf, precision=hp) + params["b1"], 0.0)
    h1 = f32(h1)
    h2 = jnp.maximum(jnp.dot(h1, w2_bf, precision=hp) + params["b2"], 0.0)
    h2 = f32(h2)
    cls_ref = jnp.dot(h2, wc_bf, precision=hp) + params["b_cls"]
    reg_ref = jnp.dot(h2, wr_bf, precision=hp) + params["b_reg"]

    onehot = jax.nn.one_hot(labels, NUM_CLASSES, dtype=jnp.float32)
    lse = jax.scipy.special.logsumexp(cls_ref, axis=-1, keepdims=True)
    loss_cls_ref = jnp.sum(onehot * (lse - cls_ref)) / N_ROI
    diff = reg_ref - bbox_targets
    ad = jnp.abs(diff)
    loss_bbox_ref = jnp.sum(jnp.where(ad < 1.0, 0.5 * diff * diff, ad - 0.5)) / N_ROI

    assert jnp.allclose(out["cls_score"], cls_ref, atol=2e-3, rtol=2e-3)
    assert jnp.allclose(out["bbox_pred"], reg_ref, atol=2e-3, rtol=2e-3)
    assert jnp.allclose(out["loss_cls"], loss_cls_ref, atol=2e-3, rtol=2e-3)
    assert jnp.allclose(out["loss_bbox"], loss_bbox_ref, atol=2e-3, rtol=2e-3)

    print("KERNEL_OK")
</pallas_src>

<mosaic_0001>
module attributes {stable_mosaic.version = 11 : i64} {
  func.func @_rs_box_head_kernel(%arg0: i32, %arg1: memref<112x256xbf16, #tpu.memory_space<vmem>>, %arg2: memref<256x128xbf16, #tpu.memory_space<vmem>>, %arg3: memref<1x128xf32, #tpu.memory_space<vmem>>, %arg4: memref<128x128xbf16, #tpu.memory_space<vmem>>, %arg5: memref<1x128xf32, #tpu.memory_space<vmem>>, %arg6: memref<128x128xbf16, #tpu.memory_space<vmem>>, %arg7: memref<1x128xf32, #tpu.memory_space<vmem>>, %arg8: memref<112x1xi32, #tpu.memory_space<vmem>>, %arg9: memref<112x4xf32, #tpu.memory_space<vmem>>, %arg10: memref<112x4xf32, #tpu.memory_space<vmem>>, %arg11: memref<112x128xbf16, #tpu.memory_space<vmem>>, %arg12: memref<8x128xf32, #tpu.memory_space<vmem>>) attributes {dimension_semantics = [#tpu.dimension_semantics<parallel>], iteration_bounds = array<i64: 2>, scalar_prefetch = 0 : i64, scratch_operands = 0 : i64, tpu.core_type = #tpu.core_type<tc>, window_params = [{transform_indices = @transform_0, window_bounds = array<i64: 112, 256>}, {pipeline_mode = #tpu.pipeline_mode<synchronous>, transform_indices = @transform_1, window_bounds = array<i64: 256, 128>}, {pipeline_mode = #tpu.pipeline_mode<synchronous>, transform_indices = @transform_2, window_bounds = array<i64: 1, 128>}, {pipeline_mode = #tpu.pipeline_mode<synchronous>, transform_indices = @transform_3, window_bounds = array<i64: 128, 128>}, {pipeline_mode = #tpu.pipeline_mode<synchronous>, transform_indices = @transform_4, window_bounds = array<i64: 1, 128>}, {pipeline_mode = #tpu.pipeline_mode<synchronous>, transform_indices = @transform_5, window_bounds = array<i64: 128, 128>}, {pipeline_mode = #tpu.pipeline_mode<synchronous>, transform_indices = @transform_6, window_bounds = array<i64: 1, 128>}, {transform_indices = @transform_7, window_bounds = array<i64: 112, 1>}, {transform_indices = @transform_8, window_bounds = array<i64: 112, 4>}, {transform_indices = @transform_9, window_bounds = array<i64: 112, 4>}, {transform_indices = @transform_10, window_bounds = array<i64: 112, 128>}, {transform_indices = @transform_11, window_bounds = array<i64: 8, 128>}]} {
    %c0 = arith.constant 0 : index
    %c0_0 = arith.constant 0 : index
    %0 = vector.load %arg1[%c0, %c0_0] : memref<112x256xbf16, #tpu.memory_space<vmem>>, vector<112x256xbf16>
    %c0_1 = arith.constant 0 : index
    %c0_2 = arith.constant 0 : index
    %1 = vector.load %arg2[%c0_1, %c0_2] : memref<256x128xbf16, #tpu.memory_space<vmem>>, vector<256x128xbf16>
    %cst = arith.constant dense<0.000000e+00> : vector<112x128xf32>
    %2 = tpu.matmul %0, %1, %cst {dimension_numbers = #tpu.dot_dimension_numbers<[1], [0], [0], [1], [0, 0, 1, 1], [], []>} : vector<112x256xbf16>, vector<256x128xbf16>, vector<112x128xf32> -> vector<112x128xf32>
    %c0_3 = arith.constant 0 : index
    %c0_4 = arith.constant 0 : index
    %3 = vector.load %arg3[%c0_3, %c0_4] : memref<1x128xf32, #tpu.memory_space<vmem>>, vector<1x128xf32>
    %4 = vector.broadcast %3 : vector<1x128xf32> to vector<112x128xf32>
    %5 = arith.addf %2, %4 : vector<112x128xf32>
    %cst_5 = arith.constant 0.000000e+00 : f32
    %6 = vector.broadcast %cst_5 : f32 to vector<112x128xf32>
    %7 = arith.maximumf %5, %6 : vector<112x128xf32>
    %8 = arith.truncf %7 : vector<112x128xf32> to vector<112x128xbf16>
    %c0_6 = arith.constant 0 : index
    %c0_7 = arith.constant 0 : index
    %9 = vector.load %arg4[%c0_6, %c0_7] : memref<128x128xbf16, #tpu.memory_space<vmem>>, vector<128x128xbf16>
    %cst_8 = arith.constant dense<0.000000e+00> : vector<112x128xf32>
    %10 = tpu.matmul %8, %9, %cst_8 {dimension_numbers = #tpu.dot_dimension_numbers<[1], [0], [0], [1], [0, 0, 1, 1], [], []>} : vector<112x128xbf16>, vector<128x128xbf16>, vector<112x128xf32> -> vector<112x128xf32>
    %c0_9 = arith.constant 0 : index
    %c0_10 = arith.constant 0 : index
    %11 = vector.load %arg5[%c0_9, %c0_10] : memref<1x128xf32, #tpu.memory_space<vmem>>, vector<1x128xf32>
    %12 = vector.broadcast %11 : vector<1x128xf32> to vector<112x128xf32>
    %13 = arith.addf %10, %12 : vector<112x128xf32>
    %cst_11 = arith.constant 0.000000e+00 : f32
    %14 = vector.broadcast %cst_11 : f32 to vector<112x128xf32>
    %15 = arith.maximumf %13, %14 : vector<112x128xf32>
    %16 = arith.truncf %15 : vector<112x128xf32> to vector<112x128xbf16>
    %c0_12 = arith.constant 0 : index
    %c0_13 = arith.constant 0 : index
    %17 = vector.load %arg6[%c0_12, %c0_13] : memref<128x128xbf16, #tpu.memory_space<vmem>>, vector<128x128xbf16>
    %cst_14 = arith.constant dense<0.000000e+00> : vector<112x128xf32>
    %18 = tpu.matmul %16, %17, %cst_14 {dimension_numbers = #tpu.dot_dimension_numbers<[1], [0], [0], [1], [0, 0, 1, 1], [], []>} : vector<112x128xbf16>, vector<128x128xbf16>, vector<112x128xf32> -> vector<112x128xf32>
    %c0_15 = arith.constant 0 : index
    %c0_16 = arith.constant 0 : index
    %19 = vector.load %arg7[%c0_15, %c0_16] : memref<1x128xf32, #tpu.memory_space<vmem>>, vector<1x128xf32>
    %20 = vector.broadcast %19 : vector<1x128xf32> to vector<112x128xf32>
    %21 = arith.addf %18, %20 : vector<112x128xf32>
    %22 = arith.truncf %21 : vector<112x128xf32> to vector<112x128xbf16>
    %c0_17 = arith.constant 0 : index
    %c0_18 = arith.constant 0 : index
    %23 = vector.load %arg11[%c0_17, %c0_18] : memref<112x128xbf16, #tpu.memory_space<vmem>>, vector<112x128xbf16>
    tpu.vector_store %arg11[%c0_17, %c0_18], %22 {strides = array<i32>} : memref<112x128xbf16, #tpu.memory_space<vmem>>, vector<112x128xbf16>,
    %24 = tpu.iota {dimensions = array<i32: 1>} : vector<112x128xi32>
    %c4_i32 = arith.constant 4 : i32
    %25 = vector.broadcast %c4_i32 : i32 to vector<112x128xi32>
    %26 = arith.cmpi sge, %24, %25 : vector<112x128xi32>
    %c12_i32 = arith.constant 12 : i32
    %27 = vector.broadcast %c12_i32 : i32 to vector<112x128xi32>
    %28 = arith.cmpi slt, %24, %27 : vector<112x128xi32>
    %29 = arith.andi %26, %28 : vector<112x128xi1>
    %cst_19 = arith.constant 0xFF800000 : f32
    %30 = vector.broadcast %cst_19 : f32 to vector<112x128xf32>
    %31 = arith.select %29, %21, %30 : vector<112x128xi1>, vector<112x128xf32>
    %cst_20 = arith.constant dense<0xFF800000> : vector<112xf32>
    %32 = vector.multi_reduction <maximumf>, %31, %cst_20 [1] : vector<112x128xf32> to vector<112xf32>
    %33 = vector.shape_cast %32 : vector<112xf32> to vector<112x1xf32>
    %34 = vector.broadcast %33 : vector<112x1xf32> to vector<112x128xf32>
    %35 = arith.subf %31, %34 : vector<112x128xf32>
    %36 = math.exp %35 : vector<112x128xf32>
    %cst_21 = arith.constant dense<0.000000e+00> : vector<112xf32>
    %37 = vector.multi_reduction <add>, %36, %cst_21 [1] : vector<112x128xf32> to vector<112xf32>
    %38 = vector.shape_cast %37 : vector<112xf32> to vector<112x1xf32>
    %39 = math.log %38 : vector<112x1xf32>
    %40 = arith.addf %39, %33 : vector<112x1xf32>
    %c0_22 = arith.constant 0 : index
    %c0_23 = arith.constant 0 : index
    %41 = vector.load %arg8[%c0_22, %c0_23] : memref<112x1xi32, #tpu.memory_space<vmem>>, vector<112x1xi32>
    %c4_i32_24 = arith.constant 4 : i32
    %42 = vector.broadcast %c4_i32_24 : i32 to vector<112x1xi32>
    %43 = arith.addi %41, %42 : vector<112x1xi32>
    %44 = vector.broadcast %43 : vector<112x1xi32> to vector<112x128xi32>
    %45 = arith.cmpi eq, %24, %44 : vector<112x128xi32>
    %c0_i32 = arith.constant 0 : i32
    %46 = vector.broadcast %c0_i32 : i32 to vector<112x1xi32>
    %47 = arith.cmpi sge, %41, %46 : vector<112x1xi32>
    %48 = vector.broadcast %47 : vector<112x1xi1> to vector<112x128xi1>
    %49 = arith.andi %45, %48 : vector<112x128xi1>
    %50 = vector.broadcast %40 : vector<112x1xf32> to vector<112x128xf32>
    %51 = arith.subf %50, %21 : vector<112x128xf32>
    %cst_25 = arith.constant 0.000000e+00 : f32
    %52 = vector.broadcast %cst_25 : f32 to vector<112x128xf32>
    %53 = arith.select %49, %51, %52 : vector<112x128xi1>, vector<112x128xf32>
    %54 = vector.shape_cast %53 : vector<112x128xf32> to vector<1x112x128xf32>
    %cst_26 = arith.constant dense<0.000000e+00> : vector<1xf32>
    %55 = vector.multi_reduction <add>, %54, %cst_26 [1, 2] : vector<1x112x128xf32> to vector<1xf32>
    %56 = vector.shape_cast %55 : vector<1xf32> to vector<1x1x1xf32>
    %57 = vector.extract %56[0, 0, 0] : f32 from vector<1x1x1xf32>
    %58 = vector.extract_strided_slice %21 {offsets = [0, 0], sizes = [112, 4], strides = [1, 1]} : vector<112x128xf32> to vector<112x4xf32>
    %c0_27 = arith.constant 0 : index
    %c0_28 = arith.constant 0 : index
    %59 = vector.load %arg9[%c0_27, %c0_28] : memref<112x4xf32, #tpu.memory_space<vmem>>, vector<112x4xf32>
    %60 = arith.subf %58, %59 : vector<112x4xf32>
    %61 = math.absf %60 : vector<112x4xf32>
    %cst_29 = arith.constant 1.000000e+00 : f32
    %62 = vector.broadcast %cst_29 : f32 to vector<112x4xf32>
    %63 = arith.cmpf olt, %61, %62 : vector<112x4xf32>
    %cst_30 = arith.constant 5.000000e-01 : f32
    %64 = vector.broadcast %cst_30 : f32 to vector<112x4xf32>
    %65 = arith.mulf %64, %60 : vector<112x4xf32>
    %66 = arith.mulf %65, %60 : vector<112x4xf32>
    %cst_31 = arith.constant 5.000000e-01 : f32
    %67 = vector.broadcast %cst_31 : f32 to vector<112x4xf32>
    %68 = arith.subf %61, %67 : vector<112x4xf32>
    %69 = arith.select %63, %66, %68 : vector<112x4xi1>, vector<112x4xf32>
    %c0_32 = arith.constant 0 : index
    %c0_33 = arith.constant 0 : index
    %70 = vector.load %arg10[%c0_32, %c0_33] : memref<112x4xf32, #tpu.memory_space<vmem>>, vector<112x4xf32>
    %71 = arith.mulf %69, %70 : vector<112x4xf32>
    %72 = vector.shape_cast %71 : vector<112x4xf32> to vector<1x112x4xf32>
    %cst_34 = arith.constant dense<0.000000e+00> : vector<1xf32>
    %73 = vector.multi_reduction <add>, %72, %cst_34 [1, 2] : vector<1x112x4xf32> to vector<1xf32>
    %74 = vector.shape_cast %73 : vector<1xf32> to vector<1x1x1xf32>
    %75 = vector.extract %74[0, 0, 0] : f32 from vector<1x1x1xf32>
    %76 = tpu.iota {dimensions = array<i32: 0>} : vector<8x128xi32>
    %77 = tpu.iota {dimensions = array<i32: 1>} : vector<8x128xi32>
    %c0_i32_35 = arith.constant 0 : i32
    %78 = vector.broadcast %c0_i32_35 : i32 to vector<8x128xi32>
    %79 = arith.cmpi eq, %76, %78 : vector<8x128xi32>
    %c0_i32_36 = arith.constant 0 : i32
    %80 = vector.broadcast %c0_i32_36 : i32 to vector<8x128xi32>
    %81 = arith.cmpi eq, %77, %80 : vector<8x128xi32>
    %82 = arith.andi %79, %81 : vector<8x128xi1>
    %c0_i32_37 = arith.constant 0 : i32
    %83 = vector.broadcast %c0_i32_37 : i32 to vector<8x128xi32>
    %84 = arith.cmpi eq, %76, %83 : vector<8x128xi32>
    %c1_i32 = arith.constant 1 : i32
    %85 = vector.broadcast %c1_i32 : i32 to vector<8x128xi32>
    %86 = arith.cmpi eq, %77, %85 : vector<8x128xi32>
    %87 = arith.andi %84, %86 : vector<8x128xi1>
    %cst_38 = arith.constant 0.000000e+00 : f32
    %88 = vector.broadcast %75 : f32 to vector<8x128xf32>
    %89 = vector.broadcast %cst_38 : f32 to vector<8x128xf32>
    %90 = arith.select %87, %88, %89 : vector<8x128xi1>, vector<8x128xf32>
    %91 = vector.broadcast %57 : f32 to vector<8x128xf32>
    %92 = arith.select %82, %91, %90 : vector<8x128xi1>, vector<8x128xf32>
    %c0_39 = arith.constant 0 : index
    %c0_40 = arith.constant 0 : index
    %93 = vector.load %arg12[%c0_39, %c0_40] : memref<8x128xf32, #tpu.memory_space<vmem>>, vector<8x128xf32>
    tpu.vector_store %arg12[%c0_39, %c0_40], %92 {strides = array<i32>} : memref<8x128xf32, #tpu.memory_space<vmem>>, vector<8x128xf32>,
    return
  }
  func.func @transform_0(%arg0: i32) -> (i32, i32) {
    %c0_i32 = arith.constant 0 : i32
    %c0_i32_0 = arith.constant 0 : i32
    return %arg0, %c0_i32 : i32, i32
  }
  func.func @transform_1(%arg0: i32) -> (i32, i32) {
    %c0_i32 = arith.constant 0 : i32
    %c0_i32_0 = arith.constant 0 : i32
    %c0_i32_1 = arith.constant 0 : i32
    return %c0_i32, %c0_i32_0 : i32, i32
  }
  func.func @transform_2(%arg0: i32) -> (i32, i32) {
    %c0_i32 = arith.constant 0 : i32
    %c0_i32_0 = arith.constant 0 : i32
    %c0_i32_1 = arith.constant 0 : i32
    return %c0_i32, %c0_i32_0 : i32, i32
  }
  func.func @transform_3(%arg0: i32) -> (i32, i32) {
    %c0_i32 = arith.constant 0 : i32
    %c0_i32_0 = arith.constant 0 : i32
    %c0_i32_1 = arith.constant 0 : i32
    return %c0_i32, %c0_i32_0 : i32, i32
  }
  func.func @transform_4(%arg0: i32) -> (i32, i32) {
    %c0_i32 = arith.constant 0 : i32
    %c0_i32_0 = arith.constant 0 : i32
    %c0_i32_1 = arith.constant 0 : i32
    return %c0_i32, %c0_i32_0 : i32, i32
  }
  func.func @transform_5(%arg0: i32) -> (i32, i32) {
    %c0_i32 = arith.constant 0 : i32
    %c0_i32_0 = arith.constant 0 : i32
    %c0_i32_1 = arith.constant 0 : i32
    return %c0_i32, %c0_i32_0 : i32, i32
  }
  func.func @transform_6(%arg0: i32) -> (i32, i32) {
    %c0_i32 = arith.constant 0 : i32
    %c0_i32_0 = arith.constant 0 : i32
    %c0_i32_1 = arith.constant 0 : i32
    return %c0_i32, %c0_i32_0 : i32, i32
  }
  func.func @transform_7(%arg0: i32) -> (i32, i32) {
    %c0_i32 = arith.constant 0 : i32
    %c0_i32_0 = arith.constant 0 : i32
    return %arg0, %c0_i32 : i32, i32
  }
  func.func @transform_8(%arg0: i32) -> (i32, i32) {
    %c0_i32 = arith.constant 0 : i32
    %c0_i32_0 = arith.constant 0 : i32
    return %arg0, %c0_i32 : i32, i32
  }
  func.func @transform_9(%arg0: i32) -> (i32, i32) {
    %c0_i32 = arith.constant 0 : i32
    %c0_i32_0 = arith.constant 0 : i32
    return %arg0, %c0_i32 : i32, i32
  }
  func.func @transform_10(%arg0: i32) -> (i32, i32) {
    %c0_i32 = arith.constant 0 : i32
    %c0_i32_0 = arith.constant 0 : i32
    return %arg0, %c0_i32 : i32, i32
  }
  func.func @transform_11(%arg0: i32) -> (i32, i32) {
    %c0_i32 = arith.constant 0 : i32
    %c0_i32_0 = arith.constant 0 : i32
    return %arg0, %c0_i32 : i32, i32
  }
}

</mosaic_0001>

<llo_original>
// kernel: rs_roi_box_head.1
$region0: #{rs_roi_box_head.1}
  #allocation0 [shape = 'u32[]', space=smem, size = 0x4, offset = 0x4, fixed_abs, tag = 'smem constant byte address 0x4 - core index']
  #allocation1 [shape = 'u32[144,128]{1,0:T(1,128)}', space=vmem, size = 0x12000, scoped, tag = 'internal scratch']
  %s0 = inlined_call_operand.vmem [shape: bf16[224,256], index: 0, kind: input, shape index: {}]
  %s1 = inlined_call_operand.vmem [shape: bf16[256,128], index: 1, kind: input, shape index: {}]
  %s2 = inlined_call_operand.vmem [shape: f32[1,128], index: 2, kind: input, shape index: {}]
  %s3 = inlined_call_operand.vmem [shape: bf16[128,128], index: 3, kind: input, shape index: {}]
  %s4 = inlined_call_operand.vmem [shape: f32[1,128], index: 4, kind: input, shape index: {}]
  %s5 = inlined_call_operand.vmem [shape: bf16[128,128], index: 5, kind: input, shape index: {}]
  %s6 = inlined_call_operand.vmem [shape: f32[1,128], index: 6, kind: input, shape index: {}]
  %s7 = inlined_call_operand.vmem [shape: s32[224,1], index: 7, kind: input, shape index: {}]
  %s8 = inlined_call_operand.vmem [shape: f32[224,4], index: 8, kind: input, shape index: {}]
  %s9 = inlined_call_operand.vmem [shape: f32[224,4], index: 9, kind: input, shape index: {}]
  %s10 = inlined_call_operand.vmem [shape: bf16[224,128], index: 10, kind: output, shape index: {0}]
  %s11 = inlined_call_operand.vmem [shape: f32[16,128], index: 11, kind: output, shape index: {1}]
  %12 = xla_tuple %s10, %s11
  %s13 = sld [smem:[#allocation0]]
  $region81: #{rs_roi_box_head.1} parent=0
    _
  %s15 = ssub.s32 1, %s13
  %s16 = scalar_select 0, %s15, %s13
  loop: start=0, step=1, limit=4
  $region2: #{rs_roi_box_head.1} parent=0 // loop_pre_header
    _
  $region3: #{rs_roi_box_head.1} parent=0 // loop_header
    %s18 = sphi 0, %s22
    %p19 = scmp.ge.s32.totalorder %s18, 4
    %s28 = sphi 0, %s30
    %s31 = sphi 0, %s28
    %s32 = sphi 0, %s31
    %s48 = sphi 0, %s32
    %s52 = sphi 0, %s52
    %s54 = sphi 0, %s52
    %s55 = sphi 0, %s54
    %s69 = sphi 0, %s55
    %s73 = sphi 0, %s73
    %s75 = sphi 0, %s73
    %s76 = sphi 0, %s75
    %s90 = sphi 0, %s76
    %s94 = sphi 0, %s94
    %s96 = sphi 0, %s94
    %s97 = sphi 0, %s96
    %s111 = sphi 0, %s97
    %s115 = sphi 0, %s115
    %s117 = sphi 0, %s115
    %s118 = sphi 0, %s117
    %s132 = sphi 0, %s118
    %s136 = sphi 0, %s136
    %s138 = sphi 0, %s136
    %s139 = sphi 0, %s138
    %s153 = sphi 0, %s139
    %s157 = sphi 0, %s157
    %s159 = sphi 0, %s157
    %s160 = sphi 0, %s159
    %s174 = sphi 0, %s160
    %s180 = sphi 0, %s182
    %s183 = sphi 0, %s180
    %s184 = sphi 0, %s183
    %s200 = sphi 0, %s184
    %s206 = sphi 0, %s208
    %s209 = sphi 0, %s206
    %s210 = sphi 0, %s209
    %s226 = sphi 0, %s210
    %s232 = sphi 0, %s234
    %s235 = sphi 0, %s232
    %s236 = sphi 0, %s235
    %s252 = sphi 0, %s236
    %s258 = sphi 0, %s260
    %s261 = sphi 0, %s258
    %s262 = sphi 0, %s261
    %s278 = sphi 0, %s262
    %s284 = sphi 0, %s286
    %s287 = sphi 0, %s284
    %s288 = sphi 0, %s287
    %s304 = sphi 0, %s288
  $region4: #{rs_roi_box_head.1} parent=0 // loop_header_branch
    %21 = sbr.rel (%p19) target = $region8
  $region5: #{rs_roi_box_head.1} parent=0 // loop_body
    %s23 = ssub.s32 %s18, 1
    %s24 = ssub.s32 %s18, 2
    %s25 = sadd.s32 %s18, 1
    %s26 = ssub.s32 %s18, %s25
    %p27 = scmp.eq.s32.totalorder %s26, 0
    %s29 = sadd.s32 %s28, 1
    %s30 = scalar_select %p27, %s28, %s29
    %p33 = pneg %p27
    %p34 = scmp.eq.s32.totalorder %s18, 1
    %p35 = por %p33, %p34
    %p36 = scmp.ne.s32.totalorder %s28, %s31
    %p37 = scmp.eq.s32.totalorder %s18, 0
    %p38 = por %p36, %p37
    %p39 = scmp.ne.s32.totalorder %s28, %s31
    %p40 = scmp.eq.s32.totalorder %s23, 1
    %p41 = por %p39, %p40
    %p42 = scmp.ne.s32.totalorder %s31, %s32
    %p43 = scmp.eq.s32.totalorder %s23, 0
    %p44 = por %p42, %p43
    %p45 = scmp.ne.s32.totalorder %s31, %s32
    %p46 = scmp.eq.s32.totalorder %s24, 1
    %p47 = por %p45, %p46
    %p49 = scmp.ne.s32.totalorder %s32, %s48
    %p50 = scmp.eq.s32.totalorder %s24, 0
    %p51 = por %p49, %p50
    %s53 = sadd.s32 %s52, 1
    %p56 = scmp.eq.s32.totalorder %s18, 1
    %p57 = scmp.ne.s32.totalorder %s52, %s54
    %p58 = scmp.eq.s32.totalorder %s18, 0
    %p59 = por %p57, %p58
    %p60 = scmp.ne.s32.totalorder %s52, %s54
    %p61 = scmp.eq.s32.totalorder %s23, 1
    %p62 = por %p60, %p61
    %p63 = scmp.ne.s32.totalorder %s54, %s55
    %p64 = scmp.eq.s32.totalorder %s23, 0
    %p65 = por %p63, %p64
    %p66 = scmp.ne.s32.totalorder %s54, %s55
    %p67 = scmp.eq.s32.totalorder %s24, 1
    %p68 = por %p66, %p67
    %p70 = scmp.ne.s32.totalorder %s55, %s69
    %p71 = scmp.eq.s32.totalorder %s24, 0
    %p72 = por %p70, %p71
    %s74 = sadd.s32 %s73, 1
    %p77 = scmp.eq.s32.totalorder %s18, 1
    %p78 = scmp.ne.s32.totalorder %s73, %s75
    %p79 = scmp.eq.s32.totalorder %s18, 0
    %p80 = por %p78, %p79
    %p81 = scmp.ne.s32.totalorder %s73, %s75
    %p82 = scmp.eq.s32.totalorder %s23, 1
    %p83 = por %p81, %p82
    %p84 = scmp.ne.s32.totalorder %s75, %s76
    %p85 = scmp.eq.s32.totalorder %s23, 0
    %p86 = por %p84, %p85
    %p87 = scmp.ne.s32.totalorder %s75, %s76
    %p88 = scmp.eq.s32.totalorder %s24, 1
    %p89 = por %p87, %p88
    %p91 = scmp.ne.s32.totalorder %s76, %s90
    %p92 = scmp.eq.s32.totalorder %s24, 0
    %p93 = por %p91, %p92
    %s95 = sadd.s32 %s94, 1
    %p98 = scmp.eq.s32.totalorder %s18, 1
    %p99 = scmp.ne.s32.totalorder %s94, %s96
    %p100 = scmp.eq.s32.totalorder %s18, 0
    %p101 = por %p99, %p100
    %p102 = scmp.ne.s32.totalorder %s94, %s96
    %p103 = scmp.eq.s32.totalorder %s23, 1
    %p104 = por %p102, %p103
    %p105 = scmp.ne.s32.totalorder %s96, %s97
    %p106 = scmp.eq.s32.totalorder %s23, 0
    %p107 = por %p105, %p106
    %p108 = scmp.ne.s32.totalorder %s96, %s97
    %p109 = scmp.eq.s32.totalorder %s24, 1
    %p110 = por %p108, %p109
    %p112 = scmp.ne.s32.totalorder %s97, %s111
    %p113 = scmp.eq.s32.totalorder %s24, 0
    %p114 = por %p112, %p113
    %s116 = sadd.s32 %s115, 1
    %p119 = scmp.eq.s32.totalorder %s18, 1
    %p120 = scmp.ne.s32.totalorder %s115, %s117
    %p121 = scmp.eq.s32.totalorder %s18, 0
    %p122 = por %p120, %p121
    %p123 = scmp.ne.s32.totalorder %s115, %s117
    %p124 = scmp.eq.s32.totalorder %s23, 1
    %p125 = por %p123, %p124
    %p126 = scmp.ne.s32.totalorder %s117, %s118
    %p127 = scmp.eq.s32.totalorder %s23, 0
    %p128 = por %p126, %p127
    %p129 = scmp.ne.s32.totalorder %s117, %s118
    %p130 = scmp.eq.s32.totalorder %s24, 1
    %p131 = por %p129, %p130
    %p133 = scmp.ne.s32.totalorder %s118, %s132
    %p134 = scmp.eq.s32.totalorder %s24, 0
    %p135 = por %p133, %p134
    %s137 = sadd.s32 %s136, 1
    %p140 = scmp.eq.s32.totalorder %s18, 1
    %p141 = scmp.ne.s32.totalorder %s136, %s138
    %p142 = scmp.eq.s32.totalorder %s18, 0
    %p143 = por %p141, %p142
    %p144 = scmp.ne.s32.totalorder %s136, %s138
    %p145 = scmp.eq.s32.totalorder %s23, 1
    %p146 = por %p144, %p145
    %p147 = scmp.ne.s32.totalorder %s138, %s139
    %p148 = scmp.eq.s32.totalorder %s23, 0
    %p149 = por %p147, %p148
    %p150 = scmp.ne.s32.totalorder %s138, %s139
    %p151 = scmp.eq.s32.totalorder %s24, 1
    %p152 = por %p150, %p151
    %p154 = scmp.ne.s32.totalorder %s139, %s153
    %p155 = scmp.eq.s32.totalorder %s24, 0
    %p156 = por %p154, %p155
    %s158 = sadd.s32 %s157, 1
    %p161 = scmp.eq.s32.totalorder %s18, 1
    %p162 = scmp.ne.s32.totalorder %s157, %s159
    %p163 = scmp.eq.s32.totalorder %s18, 0
    %p164 = por %p162, %p163
    %p165 = scmp.ne.s32.totalorder %s157, %s159
    %p166 = scmp.eq.s32.totalorder %s23, 1
    %p167 = por %p165, %p166
    %p168 = scmp.ne.s32.totalorder %s159, %s160
    %p169 = scmp.eq.s32.totalorder %s23, 0
    %p170 = por %p168, %p169
    %p171 = scmp.ne.s32.totalorder %s159, %s160
    %p172 = scmp.eq.s32.totalorder %s24, 1
    %p173 = por %p171, %p172
    %p175 = scmp.ne.s32.totalorder %s160, %s174
    %p176 = scmp.eq.s32.totalorder %s24, 0
    %p177 = por %p175, %p176
    %s178 = ssub.s32 %s18, %s25
    %p179 = scmp.eq.s32.totalorder %s178, 0
    %s181 = sadd.s32 %s180, 1
    %s182 = scalar_select %p179, %s180, %s181
    %p185 = pneg %p179
    %p186 = scmp.eq.s32.totalorder %s18, 1
    %p187 = por %p185, %p186
    %p188 = scmp.ne.s32.totalorder %s180, %s183
    %p189 = scmp.eq.s32.totalorder %s18, 0
    %p190 = por %p188, %p189
    %p191 = scmp.ne.s32.totalorder %s180, %s183
    %p192 = scmp.eq.s32.totalorder %s23, 1
    %p193 = por %p191, %p192
    %p194 = scmp.ne.s32.totalorder %s183, %s184
    %p195 = scmp.eq.s32.totalorder %s23, 0
    %p196 = por %p194, %p195
    %p197 = scmp.ne.s32.totalorder %s183, %s184
    %p198 = scmp.eq.s32.totalorder %s24, 1
    %p199 = por %p197, %p198
    %p201 = scmp.ne.s32.totalorder %s184, %s200
    %p202 = scmp.eq.s32.totalorder %s24, 0
    %p203 = por %p201, %p202
    %s204 = ssub.s32 %s18, %s25
    %p205 = scmp.eq.s32.totalorder %s204, 0
    %s207 = sadd.s32 %s206, 1
    %s208 = scalar_select %p205, %s206, %s207
    %p211 = pneg %p205
    %p212 = scmp.eq.s32.totalorder %s18, 1
    %p213 = por %p211, %p212
    %p214 = scmp.ne.s32.totalorder %s206, %s209
    %p215 = scmp.eq.s32.totalorder %s18, 0
    %p216 = por %p214, %p215
    %p217 = scmp.ne.s32.totalorder %s206, %s209
    %p218 = scmp.eq.s32.totalorder %s23, 1
    %p219 = por %p217, %p218
    %p220 = scmp.ne.s32.totalorder %s209, %s210
    %p221 = scmp.eq.s32.totalorder %s23, 0
    %p222 = por %p220, %p221
    %p223 = scmp.ne.s32.totalorder %s209, %s210
    %p224 = scmp.eq.s32.totalorder %s24, 1
    %p225 = por %p223, %p224
    %p227 = scmp.ne.s32.totalorder %s210, %s226
    %p228 = scmp.eq.s32.totalorder %s24, 0
    %p229 = por %p227, %p228
    %s230 = ssub.s32 %s18, %s25
    %p231 = scmp.eq.s32.totalorder %s230, 0
    %s233 = sadd.s32 %s232, 1
    %s234 = scalar_select %p231, %s232, %s233
    %p237 = pneg %p231
    %p238 = scmp.eq.s32.totalorder %s18, 1
    %p239 = por %p237, %p238
    %p240 = scmp.ne.s32.totalorder %s232, %s235
    %p241 = scmp.eq.s32.totalorder %s18, 0
    %p242 = por %p240, %p241
    %p243 = scmp.ne.s32.totalorder %s232, %s235
    %p244 = scmp.eq.s32.totalorder %s23, 1
    %p245 = por %p243, %p244
    %p246 = scmp.ne.s32.totalorder %s235, %s236
    %p247 = scmp.eq.s32.totalorder %s23, 0
    %p248 = por %p246, %p247
    %p249 = scmp.ne.s32.totalorder %s235, %s236
    %p250 = scmp.eq.s32.totalorder %s24, 1
    %p251 = por %p249, %p250
    %p253 = scmp.ne.s32.totalorder %s236, %s252
    %p254 = scmp.eq.s32.totalorder %s24, 0
    %p255 = por %p253, %p254
    %s256 = ssub.s32 %s18, %s25
    %p257 = scmp.eq.s32.totalorder %s256, 0
    %s259 = sadd.s32 %s258, 1
    %s260 = scalar_select %p257, %s258, %s259
    %p263 = pneg %p257
    %p264 = scmp.eq.s32.totalorder %s18, 1
    %p265 = por %p263, %p264
    %p266 = scmp.ne.s32.totalorder %s258, %s261
    %p267 = scmp.eq.s32.totalorder %s18, 0
    %p268 = por %p266, %p267
    %p269 = scmp.ne.s32.totalorder %s258, %s261
    %p270 = scmp.eq.s32.totalorder %s23, 1
    %p271 = por %p269, %p270
    %p272 = scmp.ne.s32.totalorder %s261, %s262
    %p273 = scmp.eq.s32.totalorder %s23, 0
    %p274 = por %p272, %p273
    %p275 = scmp.ne.s32.totalorder %s261, %s262
    %p276 = scmp.eq.s32.totalorder %s24, 1
    %p277 = por %p275, %p276
    %p279 = scmp.ne.s32.totalorder %s262, %s278
    %p280 = scmp.eq.s32.totalorder %s24, 0
    %p281 = por %p279, %p280
    %s282 = ssub.s32 %s18, %s25
    %p283 = scmp.eq.s32.totalorder %s282, 0
    %s285 = sadd.s32 %s284, 1
    %s286 = scalar_select %p283, %s284, %s285
    %p289 = pneg %p283
    %p290 = scmp.eq.s32.totalorder %s18, 1
    %p291 = por %p289, %p290
    %p292 = scmp.ne.s32.totalorder %s284, %s287
    %p293 = scmp.eq.s32.totalorder %s18, 0
    %p294 = por %p292, %p293
    %p295 = scmp.ne.s32.totalorder %s284, %s287
    %p296 = scmp.eq.s32.totalorder %s23, 1
    %p297 = por %p295, %p296
    %p298 = scmp.ne.s32.totalorder %s287, %s288
    %p299 = scmp.eq.s32.totalorder %s23, 0
    %p300 = por %p298, %p299
    %p301 = scmp.ne.s32.totalorder %s287, %s288
    %p302 = scmp.eq.s32.totalorder %s24, 1
    %p303 = por %p301, %p302
    %p305 = scmp.ne.s32.totalorder %s288, %s304
    %p306 = scmp.eq.s32.totalorder %s24, 0
    %p307 = por %p305, %p306
    %p308 = scmp.le.s32.totalorder 1, %s18
    %p309 = scmp.lt.s32.totalorder %s18, 3
    %p310 = pnand %p308, %p309
    %p311 = pneg %p310
    // Predicated region
    $region9: #{rs_roi_box_head.1} parent=5 // pred_check
      _
    $region10: #{rs_roi_box_head.1} parent=5 // pred_check_branch
      %313 = sbr.rel (%p310) target = $region12
    $region11: #{rs_roi_box_head.1} parent=5 // pred_region
      %s314 = ssub.s32 %s18, 1
      // Predicated region
      $region13: #{rs_roi_box_head.1} parent=11 // pred_check
        %p315 = pneg %p65
      $region14: #{rs_roi_box_head.1} parent=11 // pred_check_branch
        %317 = sbr.rel (%p315) target = $region16
      $region15: #{rs_roi_box_head.1} parent=11 // pred_region
        _
      $region16: #{rs_roi_box_head.1} parent=11 // pred_fallthru
        _
      // Predicated region
      $region17: #{rs_roi_box_head.1} parent=11 // pred_check
        %p318 = pneg %p86
      $region18: #{rs_roi_box_head.1} parent=11 // pred_check_branch
        %320 = sbr.rel (%p318) target = $region20
      $region19: #{rs_roi_box_head.1} parent=11 // pred_region
        _
      $region20: #{rs_roi_box_head.1} parent=11 // pred_fallthru
        _
      // Predicated region
      $region21: #{rs_roi_box_head.1} parent=11 // pred_check
        %p321 = pneg %p107
      $region22: #{rs_roi_box_head.1} parent=11 // pred_check_branch
        %323 = sbr.rel (%p321) target = $region24
      $region23: #{rs_roi_box_head.1} parent=11 // pred_region
        _
      $region24: #{rs_roi_box_head.1} parent=11 // pred_fallthru
        _
      // Predicated region
      $region25: #{rs_roi_box_head.1} parent=11 // pred_check
        %p324 = pneg %p128
      $region26: #{rs_roi_box_head.1} parent=11 // pred_check_branch
        %326 = sbr.rel (%p324) target = $region28
      $region27: #{rs_roi_box_head.1} parent=11 // pred_region
        _
      $region28: #{rs_roi_box_head.1} parent=11 // pred_fallthru
        _
      // Predicated region
      $region29: #{rs_roi_box_head.1} parent=11 // pred_check
        %p327 = pneg %p149
      $region30: #{rs_roi_box_head.1} parent=11 // pred_check_branch
        %329 = sbr.rel (%p327) target = $region32
      $region31: #{rs_roi_box_head.1} parent=11 // pred_region
        _
      $region32: #{rs_roi_box_head.1} parent=11 // pred_fallthru
        _
      // Predicated region
      $region33: #{rs_roi_box_head.1} parent=11 // pred_check
        %p330 = pneg %p170
      $region34: #{rs_roi_box_head.1} parent=11 // pred_check_branch
        %332 = sbr.rel (%p330) target = $region36
      $region35: #{rs_roi_box_head.1} parent=11 // pred_region
        _
      $region36: #{rs_roi_box_head.1} parent=11 // pred_fallthru
        _
    $region12: #{rs_roi_box_head.1} parent=5 // pred_fallthru
      _
    %p333 = scmp.lt.s32.totalorder %s18, 2
    // Predicated region
    $region37: #{rs_roi_box_head.1} parent=5 // pred_check
      %p334 = pneg %p333
    $region38: #{rs_roi_box_head.1} parent=5 // pred_check_branch
      %336 = sbr.rel (%p334) target = $region40
    $region39: #{rs_roi_box_head.1} parent=5 // pred_region
      // Predicated region
      $region41: #{rs_roi_box_head.1} parent=39 // pred_check
        %p337 = pneg %p38
      $region42: #{rs_roi_box_head.1} parent=39 // pred_check_branch
        %339 = sbr.rel (%p337) target = $region44
      $region43: #{rs_roi_box_head.1} parent=39 // pred_region
        %s340 = smul.u32 14, %s18
        %p341 = scmp.lt.s32.totalorder %s340, 27
        %s342 = scalar_select %p341, %s340, 27
        %s343 = smul.addr %s342, 2
        %s344 = smul.addr %s343, 4
        %s345 = scalar_lea.vmem %s0, %s344
        %s346 = smul.u32 14, %s18
      $region44: #{rs_roi_box_head.1} parent=39 // pred_fallthru
        _
      // Predicated region
      $region45: #{rs_roi_box_head.1} parent=39 // pred_check
        %p347 = pneg %p190
      $region46: #{rs_roi_box_head.1} parent=39 // pred_check_branch
        %349 = sbr.rel (%p347) target = $region48
      $region47: #{rs_roi_box_head.1} parent=39 // pred_region
        %s350 = smul.u32 14, %s18
        %p351 = scmp.lt.s32.totalorder %s350, 27
        %s352 = scalar_select %p351, %s350, 27
        %s353 = smul.addr %s352, 8
        %s354 = scalar_lea.vmem %s7, %s353
        %s355 = smul.u32 14, %s18
      $region48: #{rs_roi_box_head.1} parent=39 // pred_fallthru
        _
      // Predicated region
      $region49: #{rs_roi_box_head.1} parent=39 // pred_check
        %p356 = pneg %p216
      $region50: #{rs_roi_box_head.1} parent=39 // pred_check_branch
        %358 = sbr.rel (%p356) target = $region52
      $region51: #{rs_roi_box_head.1} parent=39 // pred_region
        %s359 = smul.u32 14, %s18
        %p360 = scmp.lt.s32.totalorder %s359, 27
        %s361 = scalar_select %p360, %s359, 27
        %s362 = smul.addr %s361, 8
        %s363 = scalar_lea.vmem %s8, %s362
        %s364 = smul.u32 14, %s18
      $region52: #{rs_roi_box_head.1} parent=39 // pred_fallthru
        _
      // Predicated region
      $region53: #{rs_roi_box_head.1} parent=39 // pred_check
        %p365 = pneg %p242
      $region54: #{rs_roi_box_head.1} parent=39 // pred_check_branch
        %367 = sbr.rel (%p365) target = $region56
      $region55: #{rs_roi_box_head.1} parent=39 // pred_region
        %s368 = smul.u32 14, %s18
        %p369 = scmp.lt.s32.totalorder %s368, 27
        %s370 = scalar_select %p369, %s368, 27
        %s371 = smul.addr %s370, 8
        %s372 = scalar_lea.vmem %s9, %s371
        %s373 = smul.u32 14, %s18
      $region56: #{rs_roi_box_head.1} parent=39 // pred_fallthru
        _
    $region40: #{rs_roi_box_head.1} parent=5 // pred_fallthru
      _
    %p374 = scmp.le.s32.totalorder 1, %s18
    %p375 = scmp.lt.s32.totalorder %s18, 3
    %p376 = pnand %p374, %p375
    %p377 = pneg %p376
    // Predicated region
    $region57: #{rs_roi_box_head.1} parent=5 // pred_check
      _
    $region58: #{rs_roi_box_head.1} parent=5 // pred_check_branch
      %379 = sbr.rel (%p376) target = $region60
    $region59: #{rs_roi_box_head.1} parent=5 // pred_region
      %s380 = ssub.s32 %s18, 1
      %s381 = smul.u32 14, %s23
      %p382 = scmp.lt.s32.totalorder %s381, 27
      %s383 = scalar_select %p382, %s381, 27
      %s384 = smul.addr %s383, 2
      %s385 = smul.addr %s384, 4
      %s386 = scalar_lea.vmem %s0, %s385
      %p387 = pneg %p44
      %p388 = pneg %p41
      %p389 = pneg %p65
      %p390 = pneg %p62
      %p391 = pneg %p86
      %p392 = pneg %p83
      %p393 = pneg %p107
      %p394 = pneg %p104
      %p395 = pneg %p128
      %p396 = pneg %p125
      %p397 = pneg %p149
      %p398 = pneg %p146
      %p399 = pneg %p170
      %p400 = pneg %p167
      %s401 = smul.u32 14, %s23
      %p402 = scmp.lt.s32.totalorder %s401, 27
      %s403 = scalar_select %p402, %s401, 27
      %s404 = smul.addr %s403, 8
      %s405 = scalar_lea.vmem %s7, %s404
      %p406 = pneg %p196
      %p407 = pneg %p193
      %s408 = smul.u32 14, %s23
      %p409 = scmp.lt.s32.totalorder %s408, 27
      %s410 = scalar_select %p409, %s408, 27
      %s411 = smul.addr %s410, 8
      %s412 = scalar_lea.vmem %s8, %s411
      %p413 = pneg %p222
      %p414 = pneg %p219
      %s415 = smul.u32 14, %s23
      %p416 = scmp.lt.s32.totalorder %s415, 27
      %s417 = scalar_select %p416, %s415, 27
      %s418 = smul.addr %s417, 8
      %s419 = scalar_lea.vmem %s9, %s418
      %p420 = pneg %p248
      %p421 = pneg %p245
      %p422 = pneg %p274
      %p423 = pneg %p271
      %s424 = smul.u32 14, %s23
      %p425 = scmp.lt.s32.totalorder %s424, 27
      %s426 = scalar_select %p425, %s424, 27
      %s427 = smul.addr %s426, 4
      %s428 = scalar_lea.vmem %s10, %s427
      %p429 = pneg %p300
      %p430 = pneg %p297
      %p431 = scmp.lt.s32.totalorder %s23, 1
      %s432 = scalar_select %p431, %s23, 1
      %s433 = smul.addr %s432, 8
      %s434 = scalar_lea.vmem %s11, %s433
      %s435 = smul.u32 14, %s23
      %p436 = scmp.lt.s32.totalorder %s435, 27
      %s437 = scalar_select %p436, %s435, 27
      %s438 = smul.addr %s437, 2
      %s439 = smul.addr %s438, 4
      %s440 = scalar_lea.vmem %s0, %s439
      %s441 = smul.u32 14, %s23
      %s442 = smul.u32 14, %s23
      %p443 = scmp.lt.s32.totalorder %s442, 27
      %s444 = scalar_select %p443, %s442, 27
      %s445 = smul.addr %s444, 8
      %s446 = scalar_lea.vmem %s7, %s445
      %s447 = smul.u32 14, %s23
      %s448 = smul.u32 14, %s23
      %p449 = scmp.lt.s32.totalorder %s448, 27
      %s450 = scalar_select %p449, %s448, 27
      %s451 = smul.addr %s450, 8
      %s452 = scalar_lea.vmem %s8, %s451
      %s453 = smul.u32 14, %s23
      %s454 = smul.u32 14, %s23
      %p455 = scmp.lt.s32.totalorder %s454, 27
      %s456 = scalar_select %p455, %s454, 27
      %s457 = smul.addr %s456, 8
      %s458 = scalar_lea.vmem %s9, %s457
      %s459 = smul.u32 14, %s23
      %s460 = smul.u32 14, %s23
      %p461 = scmp.lt.s32.totalorder %s460, 27
      %s462 = scalar_select %p461, %s460, 27
      %s463 = smul.addr %s462, 4
      %s464 = scalar_lea.vmem %s10, %s463
      %s465 = smul.u32 14, %s23
      %p466 = scmp.lt.s32.totalorder %s23, 1
      %s467 = scalar_select %p466, %s23, 1
      %s468 = smul.addr %s467, 8
      %s469 = scalar_lea.vmem %s11, %s468
      %v471 = vld [vmem:[%s440] sm:$0xff]
      %v472 = vld [vmem:[%s440 + $0x8] sm:$0xff]
      %v473 = vld [vmem:[%s440 + $0x10] sm:$0xff]
      %v474 = vld [vmem:[%s440 + $0x18] sm:$0xff]
      %v475 = vld [vmem:[%s440 + $0x20] sm:$0xff]
      %v476 = vld [vmem:[%s440 + $0x28] sm:$0xff]
      %v477 = vld [vmem:[%s440 + $0x30] sm:$0xff]
      %v478 = vld [vmem:[%s440 + $0x38] sm:$0xff]
      %v479 = vld [vmem:[%s440 + $0x40] sm:$0xff]
      %v480 = vld [vmem:[%s440 + $0x48] sm:$0xff]
      %v481 = vld [vmem:[%s440 + $0x50] sm:$0xff]
      %v482 = vld [vmem:[%s440 + $0x58] sm:$0xff]
      %v483 = vld [vmem:[%s440 + $0x60] sm:$0xff]
      %v484 = vld [vmem:[%s440 + $0x68] sm:$0xff]
      %v485 = vld [vmem:[%s1] sm:$0xf]
      %v486 = vld [vmem:[%s1 + $0x4] sm:$0xf]
      %v487 = vld [vmem:[%s1 + $0x8] sm:$0xf]
      %v488 = vld [vmem:[%s1 + $0xc] sm:$0xf]
      %v489 = vld [vmem:[%s1 + $0x10] sm:$0xf]
      %v490 = vld [vmem:[%s1 + $0x14] sm:$0xf]
      %v491 = vld [vmem:[%s1 + $0x18] sm:$0xf]
      %v492 = vld [vmem:[%s1 + $0x1c] sm:$0xf]
      %v493 = vld [vmem:[%s1 + $0x20] sm:$0xf]
      %v494 = vld [vmem:[%s1 + $0x24] sm:$0xf]
      %v495 = vld [vmem:[%s1 + $0x28] sm:$0xf]
      %v496 = vld [vmem:[%s1 + $0x2c] sm:$0xf]
      %v497 = vld [vmem:[%s1 + $0x30] sm:$0xf]
      %v498 = vld [vmem:[%s1 + $0x34] sm:$0xf]
      %v499 = vld [vmem:[%s1 + $0x38] sm:$0xf]
      %v500 = vld [vmem:[%s1 + $0x3c] sm:$0xf]
      %v501 = vld [vmem:[%s1 + $0x40] sm:$0xf]
      %v502 = vld [vmem:[%s1 + $0x44] sm:$0xf]
      %v503 = vld [vmem:[%s1 + $0x48] sm:$0xf]
      %v504 = vld [vmem:[%s1 + $0x4c] sm:$0xf]
      %v505 = vld [vmem:[%s1 + $0x50] sm:$0xf]
      %v506 = vld [vmem:[%s1 + $0x54] sm:$0xf]
      %v507 = vld [vmem:[%s1 + $0x58] sm:$0xf]
      %v508 = vld [vmem:[%s1 + $0x5c] sm:$0xf]
      %v509 = vld [vmem:[%s1 + $0x60] sm:$0xf]
      %v510 = vld [vmem:[%s1 + $0x64] sm:$0xf]
      %v511 = vld [vmem:[%s1 + $0x68] sm:$0xf]
      %v512 = vld [vmem:[%s1 + $0x6c] sm:$0xf]
      %v513 = vld [vmem:[%s1 + $0x70] sm:$0xf]
      %v514 = vld [vmem:[%s1 + $0x74] sm:$0xf]
      %v515 = vld [vmem:[%s1 + $0x78] sm:$0xf]
      %v516 = vld [vmem:[%s1 + $0x7c] sm:$0xf]
      %v517 = vld [vmem:[%s2] sm:$0x1]
      %v519 = vlaneseq
      %v520 = vshrl.u32 %v519, 7
      %v521 = vsub.s32 0, %v520
      %v522 = vrot.slane %v517, %v521
      %v538 = vunpack.c.l.b16 %v471
      %v539 = vunpack.c.h.b16 %v471
      %v540 = vunpack.c.l.b16 %v472
      %v541 = vunpack.c.h.b16 %v472
      %v542 = vunpack.c.l.b16 %v473
      %v543 = vunpack.c.h.b16 %v473
      %v544 = vunpack.c.l.b16 %v474
      %v545 = vunpack.c.h.b16 %v474
      %v546 = vunpack.c.l.b16 %v475
      %v547 = vunpack.c.h.b16 %v475
      %v548 = vunpack.c.l.b16 %v476
      %v549 = vunpack.c.h.b16 %v476
      %v550 = vunpack.c.l.b16 %v477
      %v551 = vunpack.c.h.b16 %v477
      %v552 = vunpack.c.l.b16 %v478
      %v553 = vunpack.c.h.b16 %v478
      %v554 = vunpack.c.l.b16 %v479
      %v555 = vunpack.c.h.b16 %v479
      %v556 = vunpack.c.l.b16 %v480
      %v557 = vunpack.c.h.b16 %v480
      %v558 = vunpack.c.l.b16 %v481
      %v559 = vunpack.c.h.b16 %v481
      %v560 = vunpack.c.l.b16 %v482
      %v561 = vunpack.c.h.b16 %v482
      %v562 = vunpack.c.l.b16 %v483
      %v563 = vunpack.c.h.b16 %v483
      %v564 = vunpack.c.l.b16 %v484
      %v565 = vunpack.c.h.b16 %v484
      %v566 = vpack.c.b16 %v540, %v538
      %v567 = vpack.c.b16 %v541, %v539
      %v568 = vpack.c.b16 %v544, %v542
      %v569 = vpack.c.b16 %v545, %v543
      %v570 = vpack.c.b16 %v548, %v546
      %v571 = vpack.c.b16 %v549, %v547
      %v572 = vpack.c.b16 %v552, %v550
      %v573 = vpack.c.b16 %v553, %v551
      %v574 = vpack.c.b16 %v556, %v554
      %v575 = vpack.c.b16 %v557, %v555
      %v576 = vpack.c.b16 %v560, %v558
      %v577 = vpack.c.b16 %v561, %v559
      %v578 = vpack.c.b16 %v564, %v562
      %v579 = vpack.c.b16 %v565, %v563
      %v626 = vunpack.c.l.b16 %v485
      %v627 = vunpack.c.l.b16 %v486
      %v628 = vunpack.c.l.b16 %v487
      %v629 = vunpack.c.l.b16 %v488
      %v630 = vunpack.c.l.b16 %v489
      %v631 = vunpack.c.l.b16 %v490
      %v632 = vunpack.c.l.b16 %v491
      %v633 = vunpack.c.l.b16 %v492
      %v634 = vunpack.c.l.b16 %v493
      %v635 = vunpack.c.l.b16 %v494
      %v636 = vunpack.c.l.b16 %v495
      %v637 = vunpack.c.l.b16 %v496
      %v638 = vunpack.c.l.b16 %v497
      %v639 = vunpack.c.l.b16 %v498
      %v640 = vunpack.c.l.b16 %v499
      %v641 = vunpack.c.l.b16 %v500
      %v642 = vunpack.c.l.b16 %v501
      %v643 = vunpack.c.l.b16 %v502
      %v644 = vunpack.c.l.b16 %v503
      %v645 = vunpack.c.l.b16 %v504
      %v646 = vunpack.c.l.b16 %v505
      %v647 = vunpack.c.l.b16 %v506
      %v648 = vunpack.c.l.b16 %v507
      %v649 = vunpack.c.l.b16 %v508
      %v650 = vunpack.c.l.b16 %v509
      %v651 = vunpack.c.l.b16 %v510
      %v652 = vunpack.c.l.b16 %v511
      %v653 = vunpack.c.l.b16 %v512
      %v654 = vunpack.c.l.b16 %v513
      %v655 = vunpack.c.l.b16 %v514
      %v656 = vunpack.c.l.b16 %v515
      %v657 = vunpack.c.l.b16 %v516
      %v658 = vpack.c.b16 %v627, %v626
      %v659 = vpack.c.b16 %v629, %v628
      %v660 = vpack.c.b16 %v631, %v630
      %v661 = vpack.c.b16 %v633, %v632
      %v662 = vpack.c.b16 %v635, %v634
      %v663 = vpack.c.b16 %v637, %v636
      %v664 = vpack.c.b16 %v639, %v638
      %v665 = vpack.c.b16 %v641, %v640
      %v666 = vpack.c.b16 %v643, %v642
      %v667 = vpack.c.b16 %v645, %v644
      %v668 = vpack.c.b16 %v647, %v646
      %v669 = vpack.c.b16 %v649, %v648
      %v670 = vpack.c.b16 %v651, %v650
      %v671 = vpack.c.b16 %v653, %v652
      %v672 = vpack.c.b16 %v655, %v654
      %v673 = vpack.c.b16 %v657, %v656
      %690 = vmatprep.subr.bf16.mxu0 0
      %691 = vmatpush1.bf16.msra.mxu0 %v658
      %692 = vmatprep.subr.bf16.mxu0 0
      %693 = vmatpush1.bf16.msra.mxu0 %v659
      %694 = vmatprep.subr.bf16.mxu0 0
      %695 = vmatpush1.bf16.msra.mxu0 %v660
      %696 = vmatprep.subr.bf16.mxu0 0
      %697 = vmatpush1.bf16.msra.mxu0 %v661
      %698 = vmatprep.subr.bf16.mxu0 0
      %699 = vmatpush1.bf16.msra.mxu0 %v662
      %700 = vmatprep.subr.bf16.mxu0 0
      %701 = vmatpush1.bf16.msra.mxu0 %v663
      %702 = vmatprep.subr.bf16.mxu0 0
      %703 = vmatpush1.bf16.msra.mxu0 %v664
      %704 = vmatprep.subr.bf16.mxu0 0
      %705 = vmatpush1.bf16.msra.mxu0 %v665
      %706 = vmatprep.subr.bf16.mxu0 0
      %707 = vmatpush1.bf16.msra.mxu0 %v666
      %708 = vmatprep.subr.bf16.mxu0 0
      %709 = vmatpush1.bf16.msra.mxu0 %v667
      %710 = vmatprep.subr.bf16.mxu0 0
      %711 = vmatpush1.bf16.msra.mxu0 %v668
      %712 = vmatprep.subr.bf16.mxu0 0
      %713 = vmatpush1.bf16.msra.mxu0 %v669
      %714 = vmatprep.subr.bf16.mxu0 0
      %715 = vmatpush1.bf16.msra.mxu0 %v670
      %716 = vmatprep.subr.bf16.mxu0 0
      %717 = vmatpush1.bf16.msra.mxu0 %v671
      %718 = vmatprep.subr.bf16.mxu0 0
      %719 = vmatpush1.bf16.msra.mxu0 %v672
      %720 = vmatprep.subr.bf16.mxu0 0
      %721 = vmatpush1.bf16.msra.mxu0 %v673
      %722 = vmatprep.mubr.bf16.mxu0 %v567
      %723 = vmatmul.mubr.bf16.gmra.mrb[0].mxu0 %v566
      %v724 = vpop.f32.mrb[0].mxu0
      %v725 = vadd.f32 %v522, %v724
      %v726 = vpop.f32.mrb[0].mxu0
      %v727 = vpop.f32.mrb[0].mxu0
      %v728 = vadd.f32 %v522, %v727
      %v729 = vpop.f32.mrb[0].mxu0
      %730 = vmatprep.mubr.bf16.mxu0 %v569
      %731 = vmatmul.mubr.bf16.gmra.mrb[0].mxu0 %v568
      %v732 = vpop.f32.mrb[0].mxu0
      %v733 = vadd.f32 %v522, %v732
      %v734 = vpop.f32.mrb[0].mxu0
      %v735 = vpop.f32.mrb[0].mxu0
      %v736 = vadd.f32 %v522, %v735
      %v737 = vpop.f32.mrb[0].mxu0
      %738 = vmatprep.mubr.bf16.mxu0 %v571
      %739 = vmatmul.mubr.bf16.gmra.mrb[0].mxu0 %v570
      %v740 = vpop.f32.mrb[0].mxu0
      %v741 = vadd.f32 %v522, %v740
      %v742 = vpop.f32.mrb[0].mxu0
      %v743 = vpop.f32.mrb[0].mxu0
      %v744 = vadd.f32 %v522, %v743
      %v745 = vpop.f32.mrb[0].mxu0
      %746 = vmatprep.mubr.bf16.mxu0 %v573
      %747 = vmatmul.mubr.bf16.gmra.mrb[0].mxu0 %v572
      %v748 = vpop.f32.mrb[0].mxu0
      %v749 = vadd.f32 %v522, %v748
      %v750 = vpop.f32.mrb[0].mxu0
      %v751 = vpop.f32.mrb[0].mxu0
      %v752 = vadd.f32 %v522, %v751
      %v753 = vpop.f32.mrb[0].mxu0
      %754 = vmatprep.mubr.bf16.mxu0 %v575
      %755 = vmatmul.mubr.bf16.gmra.mrb[0].mxu0 %v574
      %v756 = vpop.f32.mrb[0].mxu0
      %v757 = vadd.f32 %v522, %v756
      %v758 = vpop.f32.mrb[0].mxu0
      %v759 = vpop.f32.mrb[0].mxu0
      %v760 = vadd.f32 %v522, %v759
      %v761 = vpop.f32.mrb[0].mxu0
      %762 = vmatprep.mubr.bf16.mxu0 %v577
      %763 = vmatmul.mubr.bf16.gmra.mrb[0].mxu0 %v576
      %v764 = vpop.f32.mrb[0].mxu0
      %v765 = vadd.f32 %v522, %v764
      %v766 = vpop.f32.mrb[0].mxu0
      %v767 = vpop.f32.mrb[0].mxu0
      %v768 = vadd.f32 %v522, %v767
      %v769 = vpop.f32.mrb[0].mxu0
      %770 = vmatprep.mubr.bf16.mxu0 %v579
      %771 = vmatmul.mubr.bf16.gmra.mrb[0].mxu0 %v578
      %v772 = vpop.f32.mrb[0].mxu0
      %v773 = vadd.f32 %v522, %v772
      %v774 = vpop.f32.mrb[0].mxu0
      %v775 = vpop.f32.mrb[0].mxu0
      %v776 = vadd.f32 %v522, %v775
      %v777 = vpop.f32.mrb[0].mxu0
      %778 = vdwg.mxu0
      %v779 = vmax.f32 %v725, 0.0
      %v780 = vmax.f32 %v728, 0.0
      %v781 = vmax.f32 %v733, 0.0
      %v782 = vmax.f32 %v736, 0.0
      %v783 = vmax.f32 %v741, 0.0
      %v784 = vmax.f32 %v744, 0.0
      %v785 = vmax.f32 %v749, 0.0
      %v786 = vmax.f32 %v752, 0.0
      %v787 = vmax.f32 %v757, 0.0
      %v788 = vmax.f32 %v760, 0.0
      %v789 = vmax.f32 %v765, 0.0
      %v790 = vmax.f32 %v768, 0.0
      %v791 = vmax.f32 %v773, 0.0
      %v792 = vmax.f32 %v776, 0.0
      %v793 = vpack.c.bf16 %v780, %v779
      %v794 = vpack.c.bf16 %v782, %v781
      %v795 = vpack.c.bf16 %v784, %v783
      %v796 = vpack.c.bf16 %v786, %v785
      %v797 = vpack.c.bf16 %v788, %v787
      %v798 = vpack.c.bf16 %v790, %v789
      %v799 = vpack.c.bf16 %v792, %v791
      %v800 = vld [vmem:[%s3] sm:$0xf]
      %v801 = vld [vmem:[%s3 + $0x4] sm:$0xf]
      %v802 = vld [vmem:[%s3 + $0x8] sm:$0xf]
      %v803 = vld [vmem:[%s3 + $0xc] sm:$0xf]
      %v804 = vld [vmem:[%s3 + $0x10] sm:$0xf]
      %v805 = vld [vmem:[%s3 + $0x14] sm:$0xf]
      %v806 = vld [vmem:[%s3 + $0x18] sm:$0xf]
      %v807 = vld [vmem:[%s3 + $0x1c] sm:$0xf]
      %v808 = vld [vmem:[%s3 + $0x20] sm:$0xf]
      %v809 = vld [vmem:[%s3 + $0x24] sm:$0xf]
      %v810 = vld [vmem:[%s3 + $0x28] sm:$0xf]
      %v811 = vld [vmem:[%s3 + $0x2c] sm:$0xf]
      %v812 = vld [vmem:[%s3 + $0x30] sm:$0xf]
      %v813 = vld [vmem:[%s3 + $0x34] sm:$0xf]
      %v814 = vld [vmem:[%s3 + $0x38] sm:$0xf]
      %v815 = vld [vmem:[%s3 + $0x3c] sm:$0xf]
      %v816 = vld [vmem:[%s4] sm:$0x1]
      %v818 = vlaneseq
      %v819 = vshrl.u32 %v818, 7
      %v820 = vsub.s32 0, %v819
      %v821 = vrot.slane %v816, %v820
      %v839 = vunpack.c.l.b16 %v800
      %v840 = vunpack.c.l.b16 %v801
      %v841 = vunpack.c.l.b16 %v802
      %v842 = vunpack.c.l.b16 %v803
      %v843 = vunpack.c.l.b16 %v804
      %v844 = vunpack.c.l.b16 %v805
      %v845 = vunpack.c.l.b16 %v806
      %v846 = vunpack.c.l.b16 %v807
      %v847 = vunpack.c.l.b16 %v808
      %v848 = vunpack.c.l.b16 %v809
      %v849 = vunpack.c.l.b16 %v810
      %v850 = vunpack.c.l.b16 %v811
      %v851 = vunpack.c.l.b16 %v812
      %v852 = vunpack.c.l.b16 %v813
      %v853 = vunpack.c.l.b16 %v814
      %v854 = vunpack.c.l.b16 %v815
      %v855 = vpack.c.b16 %v840, %v839
      %v856 = vpack.c.b16 %v842, %v841
      %v857 = vpack.c.b16 %v844, %v843
      %v858 = vpack.c.b16 %v846, %v845
      %v859 = vpack.c.b16 %v848, %v847
      %v860 = vpack.c.b16 %v850, %v849
      %v861 = vpack.c.b16 %v852, %v851
      %v862 = vpack.c.b16 %v854, %v853
      %871 = vmatprep.subr.bf16.mxu0 0
      %872 = vmatpush1.bf16.msra.mxu0 %v855
      %873 = vmatprep.subr.bf16.mxu0 0
      %874 = vmatpush1.bf16.msra.mxu0 %v856
      %875 = vmatprep.subr.bf16.mxu0 0
      %876 = vmatpush1.bf16.msra.mxu0 %v857
      %877 = vmatprep.subr.bf16.mxu0 0
      %878 = vmatpush1.bf16.msra.mxu0 %v858
      %879 = vmatprep.subr.bf16.mxu0 0
      %880 = vmatpush1.bf16.msra.mxu0 %v859
      %881 = vmatprep.subr.bf16.mxu0 0
      %882 = vmatpush1.bf16.msra.mxu0 %v860
      %883 = vmatprep.subr.bf16.mxu0 0
      %884 = vmatpush1.bf16.msra.mxu0 %v861
      %885 = vmatprep.subr.bf16.mxu0 0
      %886 = vmatpush1.bf16.msra.mxu0 %v862
      %887 = vmatprep.subr.bf16.mxu0 0
      %888 = vmatpush1.bf16.msra.mxu0 0
      %889 = vmatprep.subr.bf16.mxu0 0
      %890 = vmatpush1.bf16.msra.mxu0 0
      %891 = vmatprep.subr.bf16.mxu0 0
      %892 = vmatpush1.bf16.msra.mxu0 0
      %893 = vmatprep.subr.bf16.mxu0 0
      %894 = vmatpush1.bf16.msra.mxu0 0
      %895 = vmatprep.subr.bf16.mxu0 0
      %896 = vmatpush1.bf16.msra.mxu0 0
      %897 = vmatprep.subr.bf16.mxu0 0
      %898 = vmatpush1.bf16.msra.mxu0 0
      %899 = vmatprep.subr.bf16.mxu0 0
      %900 = vmatpush1.bf16.msra.mxu0 0
      %901 = vmatprep.subr.bf16.mxu0 0
      %902 = vmatpush1.bf16.msra.mxu0 0
      %903 = vmatprep.mubr.bf16.mxu0 0
      %904 = vmatmul.mubr.bf16.gmra.mrb[0].mxu0 %v793
      %v905 = vpop.f32.mrb[0].mxu0
      %v906 = vadd.f32 %v821, %v905
      %v907 = vpop.f32.mrb[0].mxu0
      %v908 = vpop.f32.mrb[0].mxu0
      %v909 = vadd.f32 %v821, %v908
      %v910 = vpop.f32.mrb[0].mxu0
      %911 = vmatprep.mubr.bf16.mxu0 0
      %912 = vmatmul.mubr.bf16.gmra.mrb[0].mxu0 %v794
      %v913 = vpop.f32.mrb[0].mxu0
      %v914 = vadd.f32 %v821, %v913
      %v915 = vpop.f32.mrb[0].mxu0
      %v916 = vpop.f32.mrb[0].mxu0
      %v917 = vadd.f32 %v821, %v916
      %v918 = vpop.f32.mrb[0].mxu0
      %919 = vmatprep.mubr.bf16.mxu0 0
      %920 = vmatmul.mubr.bf16.gmra.mrb[0].mxu0 %v795
      %v921 = vpop.f32.mrb[0].mxu0
      %v922 = vadd.f32 %v821, %v921
      %v923 = vpop.f32.mrb[0].mxu0
      %v924 = vpop.f32.mrb[0].mxu0
      %v925 = vadd.f32 %v821, %v924
      %v926 = vpop.f32.mrb[0].mxu0
      %927 = vmatprep.mubr.bf16.mxu0 0
      %928 = vmatmul.mubr.bf16.gmra.mrb[0].mxu0 %v796
      %v929 = vpop.f32.mrb[0].mxu0
      %v930 = vadd.f32 %v821, %v929
      %v931 = vpop.f32.mrb[0].mxu0
      %v932 = vpop.f32.mrb[0].mxu0
      %v933 = vadd.f32 %v821, %v932
      %v934 = vpop.f32.mrb[0].mxu0
      %935 = vmatprep.mubr.bf16.mxu0 0
      %936 = vmatmul.mubr.bf16.gmra.mrb[0].mxu0 %v797
      %v937 = vpop.f32.mrb[0].mxu0
      %v938 = vadd.f32 %v821, %v937
      %v939 = vpop.f32.mrb[0].mxu0
      %v940 = vpop.f32.mrb[0].mxu0
      %v941 = vadd.f32 %v821, %v940
      %v942 = vpop.f32.mrb[0].mxu0
      %943 = vmatprep.mubr.bf16.mxu0 0
      %944 = vmatmul.mubr.bf16.gmra.mrb[0].mxu0 %v798
      %v945 = vpop.f32.mrb[0].mxu0
      %v946 = vadd.f32 %v821, %v945
      %v947 = vpop.f32.mrb[0].mxu0
      %v948 = vpop.f32.mrb[0].mxu0
      %v949 = vadd.f32 %v821, %v948
      %v950 = vpop.f32.mrb[0].mxu0
      %951 = vmatprep.mubr.bf16.mxu0 0
      %952 = vmatmul.mubr.bf16.gmra.mrb[0].mxu0 %v799
      %v953 = vpop.f32.mrb[0].mxu0
      %v954 = vadd.f32 %v821, %v953
      %v955 = vpop.f32.mrb[0].mxu0
      %v956 = vpop.f32.mrb[0].mxu0
      %v957 = vadd.f32 %v821, %v956
      %v958 = vpop.f32.mrb[0].mxu0
      %959 = vdwg.mxu0
      %v960 = vmax.f32 %v906, 0.0
      %v961 = vmax.f32 %v909, 0.0
      %v962 = vmax.f32 %v914, 0.0
      %v963 = vmax.f32 %v917, 0.0
      %v964 = vmax.f32 %v922, 0.0
      %v965 = vmax.f32 %v925, 0.0
      %v966 = vmax.f32 %v930, 0.0
      %v967 = vmax.f32 %v933, 0.0
      %v968 = vmax.f32 %v938, 0.0
      %v969 = vmax.f32 %v941, 0.0
      %v970 = vmax.f32 %v946, 0.0
      %v971 = vmax.f32 %v949, 0.0
      %v972 = vmax.f32 %v954, 0.0
      %v973 = vmax.f32 %v957, 0.0
      %v974 = vpack.c.bf16 %v961, %v960
      %v975 = vpack.c.bf16 %v963, %v962
      %v976 = vpack.c.bf16 %v965, %v964
      %v977 = vpack.c.bf16 %v967, %v966
      %v978 = vpack.c.bf16 %v969, %v968
      %v979 = vpack.c.bf16 %v971, %v970
      %v980 = vpack.c.bf16 %v973, %v972
      %v981 = vld [vmem:[%s5] sm:$0xf]
      %v982 = vld [vmem:[%s5 + $0x4] sm:$0xf]
      %v983 = vld [vmem:[%s5 + $0x8] sm:$0xf]
      %v984 = vld [vmem:[%s5 + $0xc] sm:$0xf]
      %v985 = vld [vmem:[%s5 + $0x10] sm:$0xf]
      %v986 = vld [vmem:[%s5 + $0x14] sm:$0xf]
      %v987 = vld [vmem:[%s5 + $0x18] sm:$0xf]
      %v988 = vld [vmem:[%s5 + $0x1c] sm:$0xf]
      %v989 = vld [vmem:[%s5 + $0x20] sm:$0xf]
      %v990 = vld [vmem:[%s5 + $0x24] sm:$0xf]
      %v991 = vld [vmem:[%s5 + $0x28] sm:$0xf]
      %v992 = vld [vmem:[%s5 + $0x2c] sm:$0xf]
      %v993 = vld [vmem:[%s5 + $0x30] sm:$0xf]
      %v994 = vld [vmem:[%s5 + $0x34] sm:$0xf]
      %v995 = vld [vmem:[%s5 + $0x38] sm:$0xf]
      %v996 = vld [vmem:[%s5 + $0x3c] sm:$0xf]
      %v997 = vld [vmem:[%s6] sm:$0x1]
      %v999 = vlaneseq
      %v1000 = vshrl.u32 %v999, 7
      %v1001 = vsub.s32 0, %v1000
      %v1002 = vrot.slane %v997, %v1001
      %v1020 = vunpack.c.l.b16 %v981
      %v1021 = vunpack.c.l.b16 %v982
      %v1022 = vunpack.c.l.b16 %v983
      %v1023 = vunpack.c.l.b16 %v984
      %v1024 = vunpack.c.l.b16 %v985
      %v1025 = vunpack.c.l.b16 %v986
      %v1026 = vunpack.c.l.b16 %v987
      %v1027 = vunpack.c.l.b16 %v988
      %v1028 = vunpack.c.l.b16 %v989
      %v1029 = vunpack.c.l.b16 %v990
      %v1030 = vunpack.c.l.b16 %v991
      %v1031 = vunpack.c.l.b16 %v992
      %v1032 = vunpack.c.l.b16 %v993
      %v1033 = vunpack.c.l.b16 %v994
      %v1034 = vunpack.c.l.b16 %v995
      %v1035 = vunpack.c.l.b16 %v996
      %v1036 = vpack.c.b16 %v1021, %v1020
      %v1037 = vpack.c.b16 %v1023, %v1022
      %v1038 = vpack.c.b16 %v1025, %v1024
      %v1039 = vpack.c.b16 %v1027, %v1026
      %v1040 = vpack.c.b16 %v1029, %v1028
      %v1041 = vpack.c.b16 %v1031, %v1030
      %v1042 = vpack.c.b16 %v1033, %v1032
      %v1043 = vpack.c.b16 %v1035, %v1034
      %1052 = vmatprep.subr.bf16.mxu0 0
      %1053 = vmatpush1.bf16.msra.mxu0 %v1036
      %1054 = vmatprep.subr.bf16.mxu0 0
      %1055 = vmatpush1.bf16.msra.mxu0 %v1037
      %1056 = vmatprep.subr.bf16.mxu0 0
      %1057 = vmatpush1.bf16.msra.mxu0 %v1038
      %1058 = vmatprep.subr.bf16.mxu0 0
      %1059 = vmatpush1.bf16.msra.mxu0 %v1039
      %1060 = vmatprep.subr.bf16.mxu0 0
      %1061 = vmatpush1.bf16.msra.mxu0 %v1040
      %1062 = vmatprep.subr.bf16.mxu0 0
      %1063 = vmatpush1.bf16.msra.mxu0 %v1041
      %1064 = vmatprep.subr.bf16.mxu0 0
      %1065 = vmatpush1.bf16.msra.mxu0 %v1042
      %1066 = vmatprep.subr.bf16.mxu0 0
      %1067 = vmatpush1.bf16.msra.mxu0 %v1043
      %1068 = vmatprep.subr.bf16.mxu0 0
      %1069 = vmatpush1.bf16.msra.mxu0 0
      %1070 = vmatprep.subr.bf16.mxu0 0
      %1071 = vmatpush1.bf16.msra.mxu0 0
      %1072 = vmatprep.subr.bf16.mxu0 0
      %1073 = vmatpush1.bf16.msra.mxu0 0
      %1074 = vmatprep.subr.bf16.mxu0 0
      %1075 = vmatpush1.bf16.msra.mxu0 0
      %1076 = vmatprep.subr.bf16.mxu0 0
      %1077 = vmatpush1.bf16.msra.mxu0 0
      %1078 = vmatprep.subr.bf16.mxu0 0
      %1079 = vmatpush1.bf16.msra.mxu0 0
      %1080 = vmatprep.subr.bf16.mxu0 0
      %1081 = vmatpush1.bf16.msra.mxu0 0
      %1082 = vmatprep.subr.bf16.mxu0 0
      %1083 = vmatpush1.bf16.msra.mxu0 0
      %1084 = vmatprep.mubr.bf16.mxu0 0
      %1085 = vmatmul.mubr.bf16.gmra.mrb[0].mxu0 %v974
      %v1086 = vpop.f32.mrb[0].mxu0
      %v1087 = vadd.f32 %v1002, %v1086
      %v1088 = vpop.f32.mrb[0].mxu0
      %v1089 = vpop.f32.mrb[0].mxu0
      %v1090 = vadd.f32 %v1002, %v1089
      %v1091 = vpop.f32.mrb[0].mxu0
      %1092 = vmatprep.mubr.bf16.mxu0 0
      %1093 = vmatmul.mubr.bf16.gmra.mrb[0].mxu0 %v975
      %v1094 = vpop.f32.mrb[0].mxu0
      %v1095 = vadd.f32 %v1002, %v1094
      %v1096 = vpop.f32.mrb[0].mxu0
      %v1097 = vpop.f32.mrb[0].mxu0
      %v1098 = vadd.f32 %v1002, %v1097
      %v1099 = vpop.f32.mrb[0].mxu0
      %1100 = vmatprep.mubr.bf16.mxu0 0
      %1101 = vmatmul.mubr.bf16.gmra.mrb[0].mxu0 %v976
      %v1102 = vpop.f32.mrb[0].mxu0
      %v1103 = vadd.f32 %v1002, %v1102
      %v1104 = vpop.f32.mrb[0].mxu0
      %v1105 = vpop.f32.mrb[0].mxu0
      %v1106 = vadd.f32 %v1002, %v1105
      %v1107 = vpop.f32.mrb[0].mxu0
      %1108 = vmatprep.mubr.bf16.mxu0 0
      %1109 = vmatmul.mubr.bf16.gmra.mrb[0].mxu0 %v977
      %v1110 = vpop.f32.mrb[0].mxu0
      %v1111 = vadd.f32 %v1002, %v1110
      %v1112 = vpop.f32.mrb[0].mxu0
      %v1113 = vpop.f32.mrb[0].mxu0
      %v1114 = vadd.f32 %v1002, %v1113
      %v1115 = vpop.f32.mrb[0].mxu0
      %1116 = vmatprep.mubr.bf16.mxu0 0
      %1117 = vmatmul.mubr.bf16.gmra.mrb[0].mxu0 %v978
      %v1118 = vpop.f32.mrb[0].mxu0
      %v1119 = vadd.f32 %v1002, %v1118
      %v1120 = vpop.f32.mrb[0].mxu0
      %v1121 = vpop.f32.mrb[0].mxu0
      %v1122 = vadd.f32 %v1002, %v1121
      %v1123 = vpop.f32.mrb[0].mxu0
      %1124 = vmatprep.mubr.bf16.mxu0 0
      %1125 = vmatmul.mubr.bf16.gmra.mrb[0].mxu0 %v979
      %v1126 = vpop.f32.mrb[0].mxu0
      %v1127 = vadd.f32 %v1002, %v1126
      %v1128 = vpop.f32.mrb[0].mxu0
      %v1129 = vpop.f32.mrb[0].mxu0
      %v1130 = vadd.f32 %v1002, %v1129
      %v1131 = vpop.f32.mrb[0].mxu0
      %1132 = vmatprep.mubr.bf16.mxu0 0
      %1133 = vmatmul.mubr.bf16.gmra.mrb[0].mxu0 %v980
      %v1134 = vpop.f32.mrb[0].mxu0
      %v1135 = vadd.f32 %v1002, %v1134
      %v1136 = vpop.f32.mrb[0].mxu0
      %v1137 = vpop.f32.mrb[0].mxu0
      %v1138 = vadd.f32 %v1002, %v1137
      %v1139 = vpop.f32.mrb[0].mxu0
      %1140 = vdwg.mxu0
      %v1141 = vpack.c.bf16 %v1090, %v1087
      %v1142 = vpack.c.bf16 %v1098, %v1095
      %v1143 = vpack.c.bf16 %v1106, %v1103
      %v1144 = vpack.c.bf16 %v1114, %v1111
      %v1145 = vpack.c.bf16 %v1122, %v1119
      %v1146 = vpack.c.bf16 %v1130, %v1127
      %v1147 = vpack.c.bf16 %v1138, %v1135
      %v1155 = vunpack.c.l.b16 %v1141
      %v1156 = vunpack.c.h.b16 %v1141
      %v1157 = vunpack.c.l.b16 %v1142
      %v1158 = vunpack.c.h.b16 %v1142
      %v1159 = vunpack.c.l.b16 %v1143
      %v1160 = vunpack.c.h.b16 %v1143
      %v1161 = vunpack.c.l.b16 %v1144
      %v1162 = vunpack.c.h.b16 %v1144
      %v1163 = vunpack.c.l.b16 %v1145
      %v1164 = vunpack.c.h.b16 %v1145
      %v1165 = vunpack.c.l.b16 %v1146
      %v1166 = vunpack.c.h.b16 %v1146
      %v1167 = vunpack.c.l.b16 %v1147
      %v1168 = vunpack.c.h.b16 %v1147
      %v1169 = vpack.c.b16 %v1155, %v1155
      %v1170 = vpack.c.b16 %v1156, %v1156
      %v1171 = vpack.c.b16 %v1157, %v1157
      %v1172 = vpack.c.b16 %v1158, %v1158
      %v1173 = vpack.c.b16 %v1159, %v1159
      %v1174 = vpack.c.b16 %v1160, %v1160
      %v1175 = vpack.c.b16 %v1161, %v1161
      %v1176 = vpack.c.b16 %v1162, %v1162
      %v1177 = vpack.c.b16 %v1163, %v1163
      %v1178 = vpack.c.b16 %v1164, %v1164
      %v1179 = vpack.c.b16 %v1165, %v1165
      %v1180 = vpack.c.b16 %v1166, %v1166
      %v1181 = vpack.c.b16 %v1167, %v1167
      %v1182 = vpack.c.b16 %v1168, %v1168
      %1197 = vst [vmem:[%s464] sm:$0xf] %v1169
      %1198 = vst [vmem:[%s464 + $0x4] sm:$0xf] %v1170
      %1199 = vst [vmem:[%s464 + $0x8] sm:$0xf] %v1171
      %1200 = vst [vmem:[%s464 + $0xc] sm:$0xf] %v1172
      %1201 = vst [vmem:[%s464 + $0x10] sm:$0xf] %v1173
      %1202 = vst [vmem:[%s464 + $0x14] sm:$0xf] %v1174
      %1203 = vst [vmem:[%s464 + $0x18] sm:$0xf] %v1175
      %1204 = vst [vmem:[%s464 + $0x1c] sm:$0xf] %v1176
      %1205 = vst [vmem:[%s464 + $0x20] sm:$0xf] %v1177
      %1206 = vst [vmem:[%s464 + $0x24] sm:$0xf] %v1178
      %1207 = vst [vmem:[%s464 + $0x28] sm:$0xf] %v1179
      %1208 = vst [vmem:[%s464 + $0x2c] sm:$0xf] %v1180
      %1209 = vst [vmem:[%s464 + $0x30] sm:$0xf] %v1181
      %1210 = vst [vmem:[%s464 + $0x34] sm:$0xf] %v1182
      %v1211 = vlaneseq
      %v1212 = vand.u32 %v1211, 127
      %vm1213 = vcmp.ge.s32.totalorder %v1212, 4
      %vm1214 = vcmp.lt.s32.totalorder %v1212, 12
      %vm1215 = vmand %vm1213, %vm1214
      %v1216 = vsel %vm1215, %v1087, -inf
      %v1217 = vsel %vm1215, %v1090, -inf
      %v1218 = vsel %vm1215, %v1095, -inf
      %v1219 = vsel %vm1215, %v1098, -inf
      %v1220 = vsel %vm1215, %v1103, -inf
      %v1221 = vsel %vm1215, %v1106, -inf
      %v1222 = vsel %vm1215, %v1111, -inf
      %v1223 = vsel %vm1215, %v1114, -inf
      %v1224 = vsel %vm1215, %v1119, -inf
      %v1225 = vsel %vm1215, %v1122, -inf
      %v1226 = vsel %vm1215, %v1127, -inf
      %v1227 = vsel %vm1215, %v1130, -inf
      %v1228 = vsel %vm1215, %v1135, -inf
      %v1229 = vsel %vm1215, %v1138, -inf
      %1230 = vmax.xlane.f32.xlu0 %v1216
      %v1231 = vpop.xlane.xlu0 %1230
      %1232 = vmax.xlane.f32.xlu0 %v1217
      %v1233 = vpop.xlane.xlu0 %1232
      %1234 = vmax.xlane.f32.xlu0 %v1218
      %v1235 = vpop.xlane.xlu0 %1234
      %1236 = vmax.xlane.f32.xlu0 %v1219
      %v1237 = vpop.xlane.xlu0 %1236
      %1238 = vmax.xlane.f32.xlu0 %v1220
      %v1239 = vpop.xlane.xlu0 %1238
      %1240 = vmax.xlane.f32.xlu0 %v1221
      %v1241 = vpop.xlane.xlu0 %1240
      %1242 = vmax.xlane.f32.xlu0 %v1222
      %v1243 = vpop.xlane.xlu0 %1242
      %1244 = vmax.xlane.f32.xlu0 %v1223
      %v1245 = vpop.xlane.xlu0 %1244
      %1246 = vmax.xlane.f32.xlu0 %v1224
      %v1247 = vpop.xlane.xlu0 %1246
      %1248 = vmax.xlane.f32.xlu0 %v1225
      %v1249 = vpop.xlane.xlu0 %1248
      %1250 = vmax.xlane.f32.xlu0 %v1226
      %v1251 = vpop.xlane.xlu0 %1250
      %1252 = vmax.xlane.f32.xlu0 %v1227
      %v1253 = vpop.xlane.xlu0 %1252
      %1254 = vmax.xlane.f32.xlu0 %v1228
      %v1255 = vpop.xlane.xlu0 %1254
      %1256 = vmax.xlane.f32.xlu0 %v1229
      %v1257 = vpop.xlane.xlu0 %1256
      %v1258 = vsub.f32 %v1216, %v1231
      %v1259 = vsub.f32 %v1217, %v1233
      %v1260 = vsub.f32 %v1218, %v1235
      %v1261 = vsub.f32 %v1219, %v1237
      %v1262 = vsub.f32 %v1220, %v1239
      %v1263 = vsub.f32 %v1221, %v1241
      %v1264 = vsub.f32 %v1222, %v1243
      %v1265 = vsub.f32 %v1223, %v1245
      %v1266 = vsub.f32 %v1224, %v1247
      %v1267 = vsub.f32 %v1225, %v1249
      %v1268 = vsub.f32 %v1226, %v1251
      %v1269 = vsub.f32 %v1227, %v1253
      %v1270 = vsub.f32 %v1228, %v1255
      %v1271 = vsub.f32 %v1229, %v1257
      %v1272 = vmul.f32 %v1258, 1.442695
      %v1273 = vpow.pop %v1272
      %v1274 = vmul.f32 %v1259, 1.442695
      %v1275 = vpow.pop %v1274
      %v1276 = vmul.f32 %v1260, 1.442695
      %v1277 = vpow.pop %v1276
      %v1278 = vmul.f32 %v1261, 1.442695
      %v1279 = vpow.pop %v1278
      %v1280 = vmul.f32 %v1262, 1.442695
      %v1281 = vpow.pop %v1280
      %v1282 = vmul.f32 %v1263, 1.442695
      %v1283 = vpow.pop %v1282
      %v1284 = vmul.f32 %v1264, 1.442695
      %v1285 = vpow.pop %v1284
      %v1286 = vmul.f32 %v1265, 1.442695
      %v1287 = vpow.pop %v1286
      %v1288 = vmul.f32 %v1266, 1.442695
      %v1289 = vpow.pop %v1288
      %v1290 = vmul.f32 %v1267, 1.442695
      %v1291 = vpow.pop %v1290
      %v1292 = vmul.f32 %v1268, 1.442695
      %v1293 = vpow.pop %v1292
      %v1294 = vmul.f32 %v1269, 1.442695
      %v1295 = vpow.pop %v1294
      %v1296 = vmul.f32 %v1270, 1.442695
      %v1297 = vpow.pop %v1296
      %v1298 = vmul.f32 %v1271, 1.442695
      %v1299 = vpow.pop %v1298
      %1300 = vadd.xlane.f32.xlu0 %v1273
      %v1301 = vpop.xlane.xlu0 %1300
      %1302 = vadd.xlane.f32.xlu0 %v1275
      %v1303 = vpop.xlane.xlu0 %1302
      %1304 = vadd.xlane.f32.xlu0 %v1277
      %v1305 = vpop.xlane.xlu0 %1304
      %1306 = vadd.xlane.f32.xlu0 %v1279
      %v1307 = vpop.xlane.xlu0 %1306
      %1308 = vadd.xlane.f32.xlu0 %v1281
      %v1309 = vpop.xlane.xlu0 %1308
      %1310 = vadd.xlane.f32.xlu0 %v1283
      %v1311 = vpop.xlane.xlu0 %1310
      %1312 = vadd.xlane.f32.xlu0 %v1285
      %v1313 = vpop.xlane.xlu0 %1312
      %1314 = vadd.xlane.f32.xlu0 %v1287
      %v1315 = vpop.xlane.xlu0 %1314
      %1316 = vadd.xlane.f32.xlu0 %v1289
      %v1317 = vpop.xlane.xlu0 %1316
      %1318 = vadd.xlane.f32.xlu0 %v1291
      %v1319 = vpop.xlane.xlu0 %1318
      %1320 = vadd.xlane.f32.xlu0 %v1293
      %v1321 = vpop.xlane.xlu0 %1320
      %1322 = vadd.xlane.f32.xlu0 %v1295
      %v1323 = vpop.xlane.xlu0 %1322
      %1324 = vadd.xlane.f32.xlu0 %v1297
      %v1325 = vpop.xlane.xlu0 %1324
      %1326 = vadd.xlane.f32.xlu0 %v1299
      %v1327 = vpop.xlane.xlu0 %1326
      %v1328 = vlog2.pop %v1301
      %v1329 = vmul.f32 %v1328, 0.6931472
      %v1330 = vlog2.pop %v1303
      %v1331 = vmul.f32 %v1330, 0.6931472
      %v1332 = vlog2.pop %v1305
      %v1333 = vmul.f32 %v1332, 0.6931472
      %v1334 = vlog2.pop %v1307
      %v1335 = vmul.f32 %v1334, 0.6931472
      %v1336 = vlog2.pop %v1309
      %v1337 = vmul.f32 %v1336, 0.6931472
      %v1338 = vlog2.pop %v1311
      %v1339 = vmul.f32 %v1338, 0.6931472
      %v1340 = vlog2.pop %v1313
      %v1341 = vmul.f32 %v1340, 0.6931472
      %v1342 = vlog2.pop %v1315
      %v1343 = vmul.f32 %v1342, 0.6931472
      %v1344 = vlog2.pop %v1317
      %v1345 = vmul.f32 %v1344, 0.6931472
      %v1346 = vlog2.pop %v1319
      %v1347 = vmul.f32 %v1346, 0.6931472
      %v1348 = vlog2.pop %v1321
      %v1349 = vmul.f32 %v1348, 0.6931472
      %v1350 = vlog2.pop %v1323
      %v1351 = vmul.f32 %v1350, 0.6931472
      %v1352 = vlog2.pop %v1325
      %v1353 = vmul.f32 %v1352, 0.6931472
      %v1354 = vlog2.pop %v1327
      %v1355 = vmul.f32 %v1354, 0.6931472
      %v1356 = vadd.f32 %v1329, %v1231
      %v1357 = vadd.f32 %v1331, %v1233
      %v1358 = vadd.f32 %v1333, %v1235
      %v1359 = vadd.f32 %v1335, %v1237
      %v1360 = vadd.f32 %v1337, %v1239
      %v1361 = vadd.f32 %v1339, %v1241
      %v1362 = vadd.f32 %v1341, %v1243
      %v1363 = vadd.f32 %v1343, %v1245
      %v1364 = vadd.f32 %v1345, %v1247
      %v1365 = vadd.f32 %v1347, %v1249
      %v1366 = vadd.f32 %v1349, %v1251
      %v1367 = vadd.f32 %v1351, %v1253
      %v1368 = vadd.f32 %v1353, %v1255
      %v1369 = vadd.f32 %v1355, %v1257
      %v1370 = vld [vmem:[%s446] sm:$0xff]
      %v1371 = vld [vmem:[%s446 + $0x8] sm:$0xff]
      %v1372 = vld [vmem:[%s446 + $0x10] sm:$0xff]
      %v1373 = vld [vmem:[%s446 + $0x18] sm:$0xff]
      %v1374 = vld [vmem:[%s446 + $0x20] sm:$0xff]
      %v1375 = vld [vmem:[%s446 + $0x28] sm:$0xff]
      %v1376 = vld [vmem:[%s446 + $0x30] sm:$0xff]
      %v1377 = vld [vmem:[%s446 + $0x38] sm:$0xff]
      %v1378 = vld [vmem:[%s446 + $0x40] sm:$0xff]
      %v1379 = vld [vmem:[%s446 + $0x48] sm:$0xff]
      %v1380 = vld [vmem:[%s446 + $0x50] sm:$0xff]
      %v1381 = vld [vmem:[%s446 + $0x58] sm:$0xff]
      %v1382 = vld [vmem:[%s446 + $0x60] sm:$0xff]
      %v1383 = vld [vmem:[%s446 + $0x68] sm:$0xff]
      %v1384 = vadd.s32 %v1370, 4
      %v1385 = vadd.s32 %v1371, 4
      %v1386 = vadd.s32 %v1372, 4
      %v1387 = vadd.s32 %v1373, 4
      %v1388 = vadd.s32 %v1374, 4
      %v1389 = vadd.s32 %v1375, 4
      %v1390 = vadd.s32 %v1376, 4
      %v1391 = vadd.s32 %v1377, 4
      %v1392 = vadd.s32 %v1378, 4
      %v1393 = vadd.s32 %v1379, 4
      %v1394 = vadd.s32 %v1380, 4
      %v1395 = vadd.s32 %v1381, 4
      %v1396 = vadd.s32 %v1382, 4
      %v1397 = vadd.s32 %v1383, 4
      %1398 = vset.pattern.permute.xlu0 0
      %1399 = vperm.xlu0 %1398, %v1384
      %v1400 = vpop.permute.xlu0 %1399
      %1401 = vset.pattern.permute.xlu0 0
      %1402 = vperm.xlu0 %1401, %v1385
      %v1403 = vpop.permute.xlu0 %1402
      %1404 = vset.pattern.permute.xlu0 0
      %1405 = vperm.xlu0 %1404, %v1386
      %v1406 = vpop.permute.xlu0 %1405
      %1407 = vset.pattern.permute.xlu0 0
      %1408 = vperm.xlu0 %1407, %v1387
      %v1409 = vpop.permute.xlu0 %1408
      %1410 = vset.pattern.permute.xlu0 0
      %1411 = vperm.xlu0 %1410, %v1388
      %v1412 = vpop.permute.xlu0 %1411
      %1413 = vset.pattern.permute.xlu0 0
      %1414 = vperm.xlu0 %1413, %v1389
      %v1415 = vpop.permute.xlu0 %1414
      %1416 = vset.pattern.permute.xlu0 0
      %1417 = vperm.xlu0 %1416, %v1390
      %v1418 = vpop.permute.xlu0 %1417
      %1419 = vset.pattern.permute.xlu0 0
      %1420 = vperm.xlu0 %1419, %v1391
      %v1421 = vpop.permute.xlu0 %1420
      %1422 = vset.pattern.permute.xlu0 0
      %1423 = vperm.xlu0 %1422, %v1392
      %v1424 = vpop.permute.xlu0 %1423
      %1425 = vset.pattern.permute.xlu0 0
      %1426 = vperm.xlu0 %1425, %v1393
      %v1427 = vpop.permute.xlu0 %1426
      %1428 = vset.pattern.permute.xlu0 0
      %1429 = vperm.xlu0 %1428, %v1394
      %v1430 = vpop.permute.xlu0 %1429
      %1431 = vset.pattern.permute.xlu0 0
      %1432 = vperm.xlu0 %1431, %v1395
      %v1433 = vpop.permute.xlu0 %1432
      %1434 = vset.pattern.permute.xlu0 0
      %1435 = vperm.xlu0 %1434, %v1396
      %v1436 = vpop.permute.xlu0 %1435
      %1437 = vset.pattern.permute.xlu0 0
      %1438 = vperm.xlu0 %1437, %v1397
      %v1439 = vpop.permute.xlu0 %1438
      %vm1440 = vcmp.eq.s32.totalorder %v1212, %v1400
      %vm1441 = vcmp.eq.s32.totalorder %v1212, %v1403
      %vm1442 = vcmp.eq.s32.totalorder %v1212, %v1406
      %vm1443 = vcmp.eq.s32.totalorder %v1212, %v1409
      %vm1444 = vcmp.eq.s32.totalorder %v1212, %v1412
      %vm1445 = vcmp.eq.s32.totalorder %v1212, %v1415
      %vm1446 = vcmp.eq.s32.totalorder %v1212, %v1418
      %vm1447 = vcmp.eq.s32.totalorder %v1212, %v1421
      %vm1448 = vcmp.eq.s32.totalorder %v1212, %v1424
      %vm1449 = vcmp.eq.s32.totalorder %v1212, %v1427
      %vm1450 = vcmp.eq.s32.totalorder %v1212, %v1430
      %vm1451 = vcmp.eq.s32.totalorder %v1212, %v1433
      %vm1452 = vcmp.eq.s32.totalorder %v1212, %v1436
      %vm1453 = vcmp.eq.s32.totalorder %v1212, %v1439
      %vm1454 = vcmp.ge.s32.totalorder %v1370, 0
      %vm1455 = vcmp.ge.s32.totalorder %v1371, 0
      %vm1456 = vcmp.ge.s32.totalorder %v1372, 0
      %vm1457 = vcmp.ge.s32.totalorder %v1373, 0
      %vm1458 = vcmp.ge.s32.totalorder %v1374, 0
      %vm1459 = vcmp.ge.s32.totalorder %v1375, 0
      %vm1460 = vcmp.ge.s32.totalorder %v1376, 0
      %vm1461 = vcmp.ge.s32.totalorder %v1377, 0
      %vm1462 = vcmp.ge.s32.totalorder %v1378, 0
      %vm1463 = vcmp.ge.s32.totalorder %v1379, 0
      %vm1464 = vcmp.ge.s32.totalorder %v1380, 0
      %vm1465 = vcmp.ge.s32.totalorder %v1381, 0
      %vm1466 = vcmp.ge.s32.totalorder %v1382, 0
      %vm1467 = vcmp.ge.s32.totalorder %v1383, 0
      %v1468 = vsel %vm1454, 1, 0
      %v1469 = vsel %vm1455, 1, 0
      %v1470 = vsel %vm1456, 1, 0
      %v1471 = vsel %vm1457, 1, 0
      %v1472 = vsel %vm1458, 1, 0
      %v1473 = vsel %vm1459, 1, 0
      %v1474 = vsel %vm1460, 1, 0
      %v1475 = vsel %vm1461, 1, 0
      %v1476 = vsel %vm1462, 1, 0
      %v1477 = vsel %vm1463, 1, 0
      %v1478 = vsel %vm1464, 1, 0
      %v1479 = vsel %vm1465, 1, 0
      %v1480 = vsel %vm1466, 1, 0
      %v1481 = vsel %vm1467, 1, 0
      %1482 = vset.pattern.permute.xlu0 0
      %1483 = vperm.xlu0 %1482, %v1468
      %v1484 = vpop.permute.xlu0 %1483
      %1485 = vset.pattern.permute.xlu0 0
      %1486 = vperm.xlu0 %1485, %v1469
      %v1487 = vpop.permute.xlu0 %1486
      %1488 = vset.pattern.permute.xlu0 0
      %1489 = vperm.xlu0 %1488, %v1470
      %v1490 = vpop.permute.xlu0 %1489
      %1491 = vset.pattern.permute.xlu0 0
      %1492 = vperm.xlu0 %1491, %v1471
      %v1493 = vpop.permute.xlu0 %1492
      %1494 = vset.pattern.permute.xlu0 0
      %1495 = vperm.xlu0 %1494, %v1472
      %v1496 = vpop.permute.xlu0 %1495
      %1497 = vset.pattern.permute.xlu0 0
      %1498 = vperm.xlu0 %1497, %v1473
      %v1499 = vpop.permute.xlu0 %1498
      %1500 = vset.pattern.permute.xlu0 0
      %1501 = vperm.xlu0 %1500, %v1474
      %v1502 = vpop.permute.xlu0 %1501
      %1503 = vset.pattern.permute.xlu0 0
      %1504 = vperm.xlu0 %1503, %v1475
      %v1505 = vpop.permute.xlu0 %1504
      %1506 = vset.pattern.permute.xlu0 0
      %1507 = vperm.xlu0 %1506, %v1476
      %v1508 = vpop.permute.xlu0 %1507
      %1509 = vset.pattern.permute.xlu0 0
      %1510 = vperm.xlu0 %1509, %v1477
      %v1511 = vpop.permute.xlu0 %1510
      %1512 = vset.pattern.permute.xlu0 0
      %1513 = vperm.xlu0 %1512, %v1478
      %v1514 = vpop.permute.xlu0 %1513
      %1515 = vset.pattern.permute.xlu0 0
      %1516 = vperm.xlu0 %1515, %v1479
      %v1517 = vpop.permute.xlu0 %1516
      %1518 = vset.pattern.permute.xlu0 0
      %1519 = vperm.xlu0 %1518, %v1480
      %v1520 = vpop.permute.xlu0 %1519
      %1521 = vset.pattern.permute.xlu0 0
      %1522 = vperm.xlu0 %1521, %v1481
      %v1523 = vpop.permute.xlu0 %1522
      %vm1524 = vcmp.eq.s32.totalorder %v1484, 1
      %vm1525 = vcmp.eq.s32.totalorder %v1487, 1
      %vm1526 = vcmp.eq.s32.totalorder %v1490, 1
      %vm1527 = vcmp.eq.s32.totalorder %v1493, 1
      %vm1528 = vcmp.eq.s32.totalorder %v1496, 1
      %vm1529 = vcmp.eq.s32.totalorder %v1499, 1
      %vm1530 = vcmp.eq.s32.totalorder %v1502, 1
      %vm1531 = vcmp.eq.s32.totalorder %v1505, 1
      %vm1532 = vcmp.eq.s32.totalorder %v1508, 1
      %vm1533 = vcmp.eq.s32.totalorder %v1511, 1
      %vm1534 = vcmp.eq.s32.totalorder %v1514, 1
      %vm1535 = vcmp.eq.s32.totalorder %v1517, 1
      %vm1536 = vcmp.eq.s32.totalorder %v1520, 1
      %vm1537 = vcmp.eq.s32.totalorder %v1523, 1
      %vm1538 = vmand %vm1440, %vm1524
      %vm1539 = vmand %vm1441, %vm1525
      %vm1540 = vmand %vm1442, %vm1526
      %vm1541 = vmand %vm1443, %vm1527
      %vm1542 = vmand %vm1444, %vm1528
      %vm1543 = vmand %vm1445, %vm1529
      %vm1544 = vmand %vm1446, %vm1530
      %vm1545 = vmand %vm1447, %vm1531
      %vm1546 = vmand %vm1448, %vm1532
      %vm1547 = vmand %vm1449, %vm1533
      %vm1548 = vmand %vm1450, %vm1534
      %vm1549 = vmand %vm1451, %vm1535
      %vm1550 = vmand %vm1452, %vm1536
      %vm1551 = vmand %vm1453, %vm1537
      %v1552 = vsub.f32 %v1356, %v1087
      %v1553 = vsub.f32 %v1357, %v1090
      %v1554 = vsub.f32 %v1358, %v1095
      %v1555 = vsub.f32 %v1359, %v1098
      %v1556 = vsub.f32 %v1360, %v1103
      %v1557 = vsub.f32 %v1361, %v1106
      %v1558 = vsub.f32 %v1362, %v1111
      %v1559 = vsub.f32 %v1363, %v1114
      %v1560 = vsub.f32 %v1364, %v1119
      %v1561 = vsub.f32 %v1365, %v1122
      %v1562 = vsub.f32 %v1366, %v1127
      %v1563 = vsub.f32 %v1367, %v1130
      %v1564 = vsub.f32 %v1368, %v1135
      %v1565 = vsub.f32 %v1369, %v1138
      %v1566 = vsel %vm1538, %v1552, 0.0
      %v1567 = vsel %vm1539, %v1553, 0.0
      %v1568 = vsel %vm1540, %v1554, 0.0
      %v1569 = vsel %vm1541, %v1555, 0.0
      %v1570 = vsel %vm1542, %v1556, 0.0
      %v1571 = vsel %vm1543, %v1557, 0.0
      %v1572 = vsel %vm1544, %v1558, 0.0
      %v1573 = vsel %vm1545, %v1559, 0.0
      %v1574 = vsel %vm1546, %v1560, 0.0
      %v1575 = vsel %vm1547, %v1561, 0.0
      %v1576 = vsel %vm1548, %v1562, 0.0
      %v1577 = vsel %vm1549, %v1563, 0.0
      %v1578 = vsel %vm1550, %v1564, 0.0
      %v1579 = vsel %vm1551, %v1565, 0.0
      %v1580 = vadd.f32 %v1566, %v1567
      %v1581 = vadd.f32 %v1580, %v1568
      %v1582 = vadd.f32 %v1581, %v1569
      %v1583 = vadd.f32 %v1582, %v1570
      %v1584 = vadd.f32 %v1583, %v1571
      %v1585 = vadd.f32 %v1584, %v1572
      %v1586 = vadd.f32 %v1585, %v1573
      %v1587 = vadd.f32 %v1586, %v1574
      %v1588 = vadd.f32 %v1587, %v1575
      %v1589 = vadd.f32 %v1588, %v1576
      %v1590 = vadd.f32 %v1589, %v1577
      %v1591 = vadd.f32 %v1590, %v1578
      %v1592 = vadd.f32 %v1591, %v1579
      %1593 = vadd.xlane.f32.xlu0 %v1592
      %v1594 = vpop.xlane.xlu0 %1593
      %v1595 = vrot.slane %v1594, 4
      %v1596 = vadd.f32 %v1594, %v1595
      %v1597 = vrot.slane %v1596, 2
      %v1598 = vadd.f32 %v1596, %v1597
      %v1599 = vrot.slane %v1598, 1
      %v1600 = vadd.f32 %v1598, %v1599
      %s1601 = vtos %v1600
      %v1602 = vld [vmem:[%s452] sm:$0xff]
      %v1603 = vld [vmem:[%s452 + $0x8] sm:$0xff]
      %v1604 = vld [vmem:[%s452 + $0x10] sm:$0xff]
      %v1605 = vld [vmem:[%s452 + $0x18] sm:$0xff]
      %v1606 = vld [vmem:[%s452 + $0x20] sm:$0xff]
      %v1607 = vld [vmem:[%s452 + $0x28] sm:$0xff]
      %v1608 = vld [vmem:[%s452 + $0x30] sm:$0xff]
      %v1609 = vld [vmem:[%s452 + $0x38] sm:$0xff]
      %v1610 = vld [vmem:[%s452 + $0x40] sm:$0xff]
      %v1611 = vld [vmem:[%s452 + $0x48] sm:$0xff]
      %v1612 = vld [vmem:[%s452 + $0x50] sm:$0xff]
      %v1613 = vld [vmem:[%s452 + $0x58] sm:$0xff]
      %v1614 = vld [vmem:[%s452 + $0x60] sm:$0xff]
      %v1615 = vld [vmem:[%s452 + $0x68] sm:$0xff]
      %v1616 = vsub.f32 %v1087, %v1602
      %v1617 = vsub.f32 %v1090, %v1603
      %v1618 = vsub.f32 %v1095, %v1604
      %v1619 = vsub.f32 %v1098, %v1605
      %v1620 = vsub.f32 %v1103, %v1606
      %v1621 = vsub.f32 %v1106, %v1607
      %v1622 = vsub.f32 %v1111, %v1608
      %v1623 = vsub.f32 %v1114, %v1609
      %v1624 = vsub.f32 %v1119, %v1610
      %v1625 = vsub.f32 %v1122, %v1611
      %v1626 = vsub.f32 %v1127, %v1612
      %v1627 = vsub.f32 %v1130, %v1613
      %v1628 = vsub.f32 %v1135, %v1614
      %v1629 = vsub.f32 %v1138, %v1615
      %v1630 = vand.u32 2147483647, %v1616
      %v1631 = vand.u32 2147483647, %v1617
      %v1632 = vand.u32 2147483647, %v1618
      %v1633 = vand.u32 2147483647, %v1619
      %v1634 = vand.u32 2147483647, %v1620
      %v1635 = vand.u32 2147483647, %v1621
      %v1636 = vand.u32 2147483647, %v1622
      %v1637 = vand.u32 2147483647, %v1623
      %v1638 = vand.u32 2147483647, %v1624
      %v1639 = vand.u32 2147483647, %v1625
      %v1640 = vand.u32 2147483647, %v1626
      %v1641 = vand.u32 2147483647, %v1627
      %v1642 = vand.u32 2147483647, %v1628
      %v1643 = vand.u32 2147483647, %v1629
      %vm1644 = vcmp.lt.f32.partialorder %v1630, 1.0
      %vm1645 = vcmp.lt.f32.partialorder %v1631, 1.0
      %vm1646 = vcmp.lt.f32.partialorder %v1632, 1.0
      %vm1647 = vcmp.lt.f32.partialorder %v1633, 1.0
      %vm1648 = vcmp.lt.f32.partialorder %v1634, 1.0
      %vm1649 = vcmp.lt.f32.partialorder %v1635, 1.0
      %vm1650 = vcmp.lt.f32.partialorder %v1636, 1.0
      %vm1651 = vcmp.lt.f32.partialorder %v1637, 1.0
      %vm1652 = vcmp.lt.f32.partialorder %v1638, 1.0
      %vm1653 = vcmp.lt.f32.partialorder %v1639, 1.0
      %vm1654 = vcmp.lt.f32.partialorder %v1640, 1.0
      %vm1655 = vcmp.lt.f32.partialorder %v1641, 1.0
      %vm1656 = vcmp.lt.f32.partialorder %v1642, 1.0
      %vm1657 = vcmp.lt.f32.partialorder %v1643, 1.0
      %v1658 = vmul.f32 %v1616, 0.5
      %v1659 = vmul.f32 %v1617, 0.5
      %v1660 = vmul.f32 %v1618, 0.5
      %v1661 = vmul.f32 %v1619, 0.5
      %v1662 = vmul.f32 %v1620, 0.5
      %v1663 = vmul.f32 %v1621, 0.5
      %v1664 = vmul.f32 %v1622, 0.5
      %v1665 = vmul.f32 %v1623, 0.5
      %v1666 = vmul.f32 %v1624, 0.5
      %v1667 = vmul.f32 %v1625, 0.5
      %v1668 = vmul.f32 %v1626, 0.5
      %v1669 = vmul.f32 %v1627, 0.5
      %v1670 = vmul.f32 %v1628, 0.5
      %v1671 = vmul.f32 %v1629, 0.5
      %v1672 = vmul.f32 %v1658, %v1616
      %v1673 = vmul.f32 %v1659, %v1617
      %v1674 = vmul.f32 %v1660, %v1618
      %v1675 = vmul.f32 %v1661, %v1619
      %v1676 = vmul.f32 %v1662, %v1620
      %v1677 = vmul.f32 %v1663, %v1621
      %v1678 = vmul.f32 %v1664, %v1622
      %v1679 = vmul.f32 %v1665, %v1623
      %v1680 = vmul.f32 %v1666, %v1624
      %v1681 = vmul.f32 %v1667, %v1625
      %v1682 = vmul.f32 %v1668, %v1626
      %v1683 = vmul.f32 %v1669, %v1627
      %v1684 = vmul.f32 %v1670, %v1628
      %v1685 = vmul.f32 %v1671, %v1629
      %v1686 = vsub.f32 %v1630, 0.5
      %v1687 = vsub.f32 %v1631, 0.5
      %v1688 = vsub.f32 %v1632, 0.5
      %v1689 = vsub.f32 %v1633, 0.5
      %v1690 = vsub.f32 %v1634, 0.5
      %v1691 = vsub.f32 %v1635, 0.5
      %v1692 = vsub.f32 %v1636, 0.5
      %v1693 = vsub.f32 %v1637, 0.5
      %v1694 = vsub.f32 %v1638, 0.5
      %v1695 = vsub.f32 %v1639, 0.5
      %v1696 = vsub.f32 %v1640, 0.5
      %v1697 = vsub.f32 %v1641, 0.5
      %v1698 = vsub.f32 %v1642, 0.5
      %v1699 = vsub.f32 %v1643, 0.5
      %v1700 = vsel %vm1644, %v1672, %v1686
      %v1701 = vsel %vm1645, %v1673, %v1687
      %v1702 = vsel %vm1646, %v1674, %v1688
      %v1703 = vsel %vm1647, %v1675, %v1689
      %v1704 = vsel %vm1648, %v1676, %v1690
      %v1705 = vsel %vm1649, %v1677, %v1691
      %v1706 = vsel %vm1650, %v1678, %v1692
      %v1707 = vsel %vm1651, %v1679, %v1693
      %v1708 = vsel %vm1652, %v1680, %v1694
      %v1709 = vsel %vm1653, %v1681, %v1695
      %v1710 = vsel %vm1654, %v1682, %v1696
      %v1711 = vsel %vm1655, %v1683, %v1697
      %v1712 = vsel %vm1656, %v1684, %v1698
      %v1713 = vsel %vm1657, %v1685, %v1699
      %v1714 = vld [vmem:[%s458] sm:$0xff]
      %v1715 = vld [vmem:[%s458 + $0x8] sm:$0xff]
      %v1716 = vld [vmem:[%s458 + $0x10] sm:$0xff]
      %v1717 = vld [vmem:[%s458 + $0x18] sm:$0xff]
      %v1718 = vld [vmem:[%s458 + $0x20] sm:$0xff]
      %v1719 = vld [vmem:[%s458 + $0x28] sm:$0xff]
      %v1720 = vld [vmem:[%s458 + $0x30] sm:$0xff]
      %v1721 = vld [vmem:[%s458 + $0x38] sm:$0xff]
      %v1722 = vld [vmem:[%s458 + $0x40] sm:$0xff]
      %v1723 = vld [vmem:[%s458 + $0x48] sm:$0xff]
      %v1724 = vld [vmem:[%s458 + $0x50] sm:$0xff]
      %v1725 = vld [vmem:[%s458 + $0x58] sm:$0xff]
      %v1726 = vld [vmem:[%s458 + $0x60] sm:$0xff]
      %v1727 = vld [vmem:[%s458 + $0x68] sm:$0xff]
      %v1728 = vmul.f32 %v1700, %v1714
      %v1729 = vmul.f32 %v1701, %v1715
      %v1730 = vmul.f32 %v1702, %v1716
      %v1731 = vmul.f32 %v1703, %v1717
      %v1732 = vmul.f32 %v1704, %v1718
      %v1733 = vmul.f32 %v1705, %v1719
      %v1734 = vmul.f32 %v1706, %v1720
      %v1735 = vmul.f32 %v1707, %v1721
      %v1736 = vmul.f32 %v1708, %v1722
      %v1737 = vmul.f32 %v1709, %v1723
      %v1738 = vmul.f32 %v1710, %v1724
      %v1739 = vmul.f32 %v1711, %v1725
      %v1740 = vmul.f32 %v1712, %v1726
      %v1741 = vmul.f32 %v1713, %v1727
      %vm1742 = vcmask 31744
      %v1743 = vsel %vm1742, %v1728, 0.0
      %v1744 = vsel %vm1742, %v1729, 0.0
      %v1745 = vadd.f32 %v1743, %v1744
      %v1746 = vsel %vm1742, %v1730, 0.0
      %v1747 = vadd.f32 %v1745, %v1746
      %v1748 = vsel %vm1742, %v1731, 0.0
      %v1749 = vadd.f32 %v1747, %v1748
      %v1750 = vsel %vm1742, %v1732, 0.0
      %v1751 = vadd.f32 %v1749, %v1750
      %v1752 = vsel %vm1742, %v1733, 0.0
      %v1753 = vadd.f32 %v1751, %v1752
      %v1754 = vsel %vm1742, %v1734, 0.0
      %v1755 = vadd.f32 %v1753, %v1754
      %v1756 = vsel %vm1742, %v1735, 0.0
      %v1757 = vadd.f32 %v1755, %v1756
      %v1758 = vsel %vm1742, %v1736, 0.0
      %v1759 = vadd.f32 %v1757, %v1758
      %v1760 = vsel %vm1742, %v1737, 0.0
      %v1761 = vadd.f32 %v1759, %v1760
      %v1762 = vsel %vm1742, %v1738, 0.0
      %v1763 = vadd.f32 %v1761, %v1762
      %v1764 = vsel %vm1742, %v1739, 0.0
      %v1765 = vadd.f32 %v1763, %v1764
      %v1766 = vsel %vm1742, %v1740, 0.0
      %v1767 = vadd.f32 %v1765, %v1766
      %v1768 = vsel %vm1742, %v1741, 0.0
      %v1769 = vadd.f32 %v1767, %v1768
      %1770 = vadd.xlane.f32.xlu0 %v1769
      %v1771 = vpop.xlane.xlu0 %1770
      %v1772 = vrot.slane %v1771, 4
      %v1773 = vadd.f32 %v1771, %v1772
      %v1774 = vrot.slane %v1773, 2
      %v1775 = vadd.f32 %v1773, %v1774
      %v1776 = vrot.slane %v1775, 1
      %v1777 = vadd.f32 %v1775, %v1776
      %s1778 = vtos %v1777
      %v1779 = vlaneseq
      %v1780 = vshrl.u32 %v1779, 7
      %vm1781 = vcmp.eq.s32.totalorder %v1780, 0
      %vm1782 = vcmp.eq.s32.totalorder %v1212, 0
      %vm1783 = vmand %vm1781, %vm1782
      %vm1784 = vcmp.eq.s32.totalorder %v1212, 1
      %vm1785 = vmand %vm1781, %vm1784
      %v1786 = vstv %s1778
      %v1787 = vsel %vm1785, %v1786, 0.0
      %v1788 = vstv %s1601
      %v1789 = vsel %vm1783, %v1788, %v1787
      %1790 = vst [vmem:[%s469] sm:$0xff] %v1789
      %s1791 = smul.u32 14, %s23
      %p1792 = scmp.lt.s32.totalorder %s1791, 27
      %s1793 = scalar_select %p1792, %s1791, 27
      %s1794 = smul.addr %s1793, 4
      %s1795 = scalar_lea.vmem %s10, %s1794
      %p1796 = scmp.lt.s32.totalorder %s23, 1
      %s1797 = scalar_select %p1796, %s23, 1
      %s1798 = smul.addr %s1797, 8
      %s1799 = scalar_lea.vmem %s11, %s1798
      // Predicated region
      $region61: #{rs_roi_box_head.1} parent=59 // pred_check
        %p1800 = pneg %p271
      $region62: #{rs_roi_box_head.1} parent=59 // pred_check_branch
        %1802 = sbr.rel (%p1800) target = $region64
      $region63: #{rs_roi_box_head.1} parent=59 // pred_region
        %s1803 = smul.u32 14, %s23
      $region64: #{rs_roi_box_head.1} parent=59 // pred_fallthru
        _
      // Predicated region
      $region65: #{rs_roi_box_head.1} parent=59 // pred_check
        %p1804 = pneg %p297
      $region66: #{rs_roi_box_head.1} parent=59 // pred_check_branch
        %1806 = sbr.rel (%p1804) target = $region68
      $region67: #{rs_roi_box_head.1} parent=59 // pred_region
        _
      $region68: #{rs_roi_box_head.1} parent=59 // pred_fallthru
        _
    $region60: #{rs_roi_box_head.1} parent=5 // pred_fallthru
      _
    %p1807 = scmp.le.s32.totalorder 2, %s18
    // Predicated region
    $region69: #{rs_roi_box_head.1} parent=5 // pred_check
      %p1808 = pneg %p1807
    $region70: #{rs_roi_box_head.1} parent=5 // pred_check_branch
      %1810 = sbr.rel (%p1808) target = $region72
    $region71: #{rs_roi_box_head.1} parent=5 // pred_region
      %s1811 = ssub.s32 %s18, 2
      // Predicated region
      $region73: #{rs_roi_box_head.1} parent=71 // pred_check
        %p1812 = pneg %p277
      $region74: #{rs_roi_box_head.1} parent=71 // pred_check_branch
        %1814 = sbr.rel (%p1812) target = $region76
      $region75: #{rs_roi_box_head.1} parent=71 // pred_region
        %s1815 = smul.u32 14, %s24
        %p1816 = scmp.lt.s32.totalorder %s1815, 27
        %s1817 = scalar_select %p1816, %s1815, 27
        %s1818 = smul.addr %s1817, 4
        %s1819 = scalar_lea.vmem %s10, %s1818
      $region76: #{rs_roi_box_head.1} parent=71 // pred_fallthru
        _
      // Predicated region
      $region77: #{rs_roi_box_head.1} parent=71 // pred_check
        %p1820 = pneg %p303
      $region78: #{rs_roi_box_head.1} parent=71 // pred_check_branch
        %1822 = sbr.rel (%p1820) target = $region80
      $region79: #{rs_roi_box_head.1} parent=71 // pred_region
        %p1823 = scmp.lt.s32.totalorder %s24, 1
        %s1824 = scalar_select %p1823, %s24, 1
        %s1825 = smul.addr %s1824, 8
        %s1826 = scalar_lea.vmem %s11, %s1825
      $region80: #{rs_roi_box_head.1} parent=71 // pred_fallthru
        _
    $region72: #{rs_roi_box_head.1} parent=5 // pred_fallthru
      _
  $region6: #{rs_roi_box_head.1} parent=0 // loop_footer
    %s22 = sadd.s32 1, %s18
  $region7: #{rs_roi_box_head.1} parent=0 // loop_footer_branch
    %17 = sbr.rel target = $region3
  $region8: #{rs_roi_box_head.1} parent=0 // loop_exit
    _

</llo_original>
